<compile_context>
chip_gen: v5e
topology: v5e:2x2
jax: 0.10.0
libtpu: 0.0.40
codegen_flags: <defaults>
</compile_context>

<pallas_src>
import functools

import numpy as np
import jax
import jax.numpy as jnp
from jax import lax
from jax.experimental import pallas as pl
from jax.experimental.pallas import tpu as pltpu

WIN = 11
SIGMA = 1.5
K1, K2 = 0.01, 0.03
DATA_RANGE = 1.0
C1 = (K1 * DATA_RANGE) ** 2
C2 = (K2 * DATA_RANGE) ** 2
EPS = 1e-8


def _gaussian_kernel(win, sigma):
    x = np.arange(win, dtype=np.float64) - win // 2
    g = np.exp(-(x ** 2) / (2.0 * sigma ** 2))
    return (g / g.sum()).astype(np.float32)


def _blur_matrix(size, win, sigma):
    """(size - win + 1, size) matrix implementing a 'valid' 1-D gaussian filter."""
    g = _gaussian_kernel(win, sigma)
    out = size - win + 1
    m = np.zeros((out, size), dtype=np.float32)
    for i in range(out):
        m[i, i:i + win] = g
    return m


@functools.lru_cache(maxsize=None)
def _blur2d_t(h, w, win=WIN, sigma=SIGMA):
    """Baked constant: transposed 2-D blur matrix of shape (H*W, Ho*Wo).

    blur2d = kron(gh, gw) maps a row-major-flattened (H, W) image to the
    row-major-flattened (Ho, Wo) 'valid' gaussian-filtered image, so
    blurred = z_flat @ blur2d.T.
    """
    gh = _blur_matrix(h, win, sigma)          # (Ho, H)
    gw = _blur_matrix(w, win, sigma)          # (Wo, W)
    blur2d = np.kron(gh, gw)                  # (Ho*Wo, H*W)
    return jnp.asarray(np.ascontiguousarray(blur2d.T))  # (H*W, Ho*Wo)


def ssim_identity_kernel(x_ref, y_ref, blur_t_ref, emb_ref, loss_ref, *,
                         seg, n_valid, n_out):
    # x_ref / y_ref are zero-padded to `seg` (multiple of 8) sublanes, so every
    # stacked segment and every slice below sits exactly on a vreg tile
    # boundary -> no XLU sublane relayouts around the MXU matmul.
    x = x_ref[...]                                   # (seg, HW)
    y = y_ref[...]                                   # (seg, HW)

    # Blur [x, y, x*x, y*y, x*y] with ONE lane-dense K=HW MXU matmul against
    # the baked (HW, Ho*Wo) 'valid' gaussian blur matrix.  HIGHEST precision
    # keeps the f32 operands f32-faithful (sigma subtraction is
    # cancellation-prone); negligible cost at (5*seg, HW) x (HW, Ho*Wo).
    stacked = jnp.concatenate([x, y, x * x, y * y, x * y], axis=0)   # (5*seg, HW)
    blurred = jnp.dot(stacked, blur_t_ref[...],
                      preferred_element_type=jnp.float32,
                      precision=lax.Precision.HIGHEST)               # (5*seg, Ho*Wo)

    mu1 = blurred[0 * seg:1 * seg]
    mu2 = blurred[1 * seg:2 * seg]
    ex2 = blurred[2 * seg:3 * seg]
    ey2 = blurred[3 * seg:4 * seg]
    exy = blurred[4 * seg:5 * seg]

    mu1_sq = mu1 * mu1
    mu2_sq = mu2 * mu2
    mu1_mu2 = mu1 * mu2
    sigma1_sq = ex2 - mu1_sq
    sigma2_sq = ey2 - mu2_sq
    sigma12 = exy - mu1_mu2

    num = (2.0 * mu1_mu2 + C1) * (2.0 * sigma12 + C2)
    den = (mu1_sq + mu2_sq + C1) * (sigma1_sq + sigma2_sq + C2)
    ssim_map = num * pl.reciprocal(den)              # one exact reciprocal + mul

    # Padded rows evaluate to exactly (C1*C2)/(C1*C2) = 1 -> mask out of mean.
    row = lax.broadcasted_iota(jnp.int32, ssim_map.shape, 0)
    ssim_sum = jnp.sum(jnp.where(row < n_valid, ssim_map, 0.0))
    loss_ref[0] = 1.0 - ssim_sum * (1.0 / float(n_valid * n_out))

    # Identity loss: CosineSimilarity(dim=0) with PyTorch-style eps clamping.
    # All three 512-lane reductions collapse into a single 2x2 Gram matmul on
    # the MXU (g = e @ e.T); rsqrt runs on the EUP.
    e = emb_ref[...]                                 # (2, D)
    g = lax.dot_general(e, e,
                        dimension_numbers=(((1,), (1,)), ((), ())),
                        preferred_element_type=jnp.float32,
                        precision=lax.Precision.HIGHEST)             # (2, 2)
    r = lax.broadcasted_iota(jnp.int32, g.shape, 0)
    c = lax.broadcasted_iota(jnp.int32, g.shape, 1)
    dot = jnp.sum(jnp.where((r == 0) & (c == 1), g, 0.0))
    s1 = jnp.maximum(jnp.sum(jnp.where((r == 0) & (c == 0), g, 0.0)), EPS * EPS)
    s2 = jnp.maximum(jnp.sum(jnp.where((r == 1) & (c == 1), g, 0.0)), EPS * EPS)
    sim = dot * lax.rsqrt(s1 * s2)
    iden = 1.0 - (sim + 1.0) / 2.0
    loss_ref[1] = iden * iden * 10.0


def style_transfer_loss(output_image, target_content, out_embedding, tgt_embedding):
    n, c, h, w = output_image.shape
    b = n * c
    hw = h * w
    ho, wo = h - WIN + 1, w - WIN + 1
    seg = ((b + 7) // 8) * 8                         # 8-sublane aligned segment height

    # Lane-dense (b, H*W) slabs (free bitcast), zero-padded to `seg` sublanes
    # so every stacked segment inside the kernel is vreg-tile aligned.  Passed
    # as two separate inputs (no wrapper-side concat / extra HBM round-trip).
    x = jnp.pad(output_image.reshape(b, hw).astype(jnp.float32),
                ((0, seg - b), (0, 0)))
    y = jnp.pad(target_content.reshape(b, hw).astype(jnp.float32),
                ((0, seg - b), (0, 0)))
    blur_t = _blur2d_t(h, w)                         # (H*W, Ho*Wo) baked constant
    emb = jnp.stack([out_embedding.reshape(-1).astype(jnp.float32),
                     tgt_embedding.reshape(-1).astype(jnp.float32)], axis=0)  # (2, D)

    # Single invocation, no grid: whole problem (<0.5 MiB) fits VMEM on every
    # generation; the (2,) SMEM output avoids a padded (8,128) VMEM tile.
    losses = pl.pallas_call(
        functools.partial(ssim_identity_kernel, seg=seg, n_valid=b, n_out=ho * wo),
        out_shape=jax.ShapeDtypeStruct((2,), jnp.float32),
        in_specs=[pl.BlockSpec(memory_space=pltpu.MemorySpace.VMEM)] * 4,
        out_specs=pl.BlockSpec(memory_space=pltpu.MemorySpace.SMEM),
    )(x, y, blur_t, emb)
    return losses[0], losses[1]


if __name__ == "__main__":
    key = jax.random.PRNGKey(0)
    k1, k2, k3, k4 = jax.random.split(key, 4)

    # Images in [0, 1] like the PyTorch module (data_range=1.0), NCHW.
    output_image = jax.random.uniform(k1, (2, 3, 16, 16), dtype=jnp.float32)
    target_content = jax.random.uniform(k2, (2, 3, 16, 16), dtype=jnp.float32)

    # TODO(synk): extract_face_latent (insightface FaceAnalysis + cv2 RGB->BGR)
    # has no Pallas equivalent; 512-d embeddings are synthetic kernel inputs.
    out_embedding = jax.random.normal(k3, (512,), dtype=jnp.float32)
    tgt_embedding = jax.random.normal(k4, (512,), dtype=jnp.float32)

    loss_fn = jax.jit(style_transfer_loss)
    content_loss, identity_loss = loss_fn(
        output_image, target_content, out_embedding, tgt_embedding)
    jax.block_until_ready((content_loss, identity_loss))
    print("KERNEL_OK")
</pallas_src>

<mosaic_0001>
module attributes {stable_mosaic.version = 11 : i64} {
  func.func @ssim_identity_kernel(%arg0: memref<8x256xf32, #tpu.memory_space<vmem>>, %arg1: memref<8x256xf32, #tpu.memory_space<vmem>>, %arg2: memref<256x36xf32, #tpu.memory_space<vmem>>, %arg3: memref<2x512xf32, #tpu.memory_space<vmem>>, %arg4: memref<2xf32, #tpu.memory_space<smem>>) attributes {dimension_semantics = [], scalar_prefetch = 0 : i64, scratch_operands = 0 : i64, tpu.core_type = #tpu.core_type<tc>} {
    %c0 = arith.constant 0 : index
    %c0_0 = arith.constant 0 : index
    %0 = vector.load %arg0[%c0, %c0_0] : memref<8x256xf32, #tpu.memory_space<vmem>>, vector<8x256xf32>
    %c0_1 = arith.constant 0 : index
    %c0_2 = arith.constant 0 : index
    %1 = vector.load %arg1[%c0_1, %c0_2] : memref<8x256xf32, #tpu.memory_space<vmem>>, vector<8x256xf32>
    %2 = arith.mulf %0, %0 : vector<8x256xf32>
    %3 = arith.mulf %1, %1 : vector<8x256xf32>
    %4 = arith.mulf %0, %1 : vector<8x256xf32>
    %5 = tpu.concatenate %0, %1, %2, %3, %4 in 0 : vector<8x256xf32>, vector<8x256xf32>, vector<8x256xf32>, vector<8x256xf32>, vector<8x256xf32> -> vector<40x256xf32>
    %c0_3 = arith.constant 0 : index
    %c0_4 = arith.constant 0 : index
    %6 = vector.load %arg2[%c0_3, %c0_4] : memref<256x36xf32, #tpu.memory_space<vmem>>, vector<256x36xf32>
    %cst = arith.constant dense<0.000000e+00> : vector<40x36xf32>
    %7 = tpu.matmul %5, %6, %cst {dimension_numbers = #tpu.dot_dimension_numbers<[1], [0], [0], [1], [0, 0, 1, 1], [], []>, precision = #tpu.contract_precision<fp32>} : vector<40x256xf32>, vector<256x36xf32>, vector<40x36xf32> -> vector<40x36xf32>
    %8 = vector.extract_strided_slice %7 {offsets = [0, 0], sizes = [8, 36], strides = [1, 1]} : vector<40x36xf32> to vector<8x36xf32>
    %9 = vector.extract_strided_slice %7 {offsets = [8, 0], sizes = [8, 36], strides = [1, 1]} : vector<40x36xf32> to vector<8x36xf32>
    %10 = vector.extract_strided_slice %7 {offsets = [16, 0], sizes = [8, 36], strides = [1, 1]} : vector<40x36xf32> to vector<8x36xf32>
    %11 = vector.extract_strided_slice %7 {offsets = [24, 0], sizes = [8, 36], strides = [1, 1]} : vector<40x36xf32> to vector<8x36xf32>
    %12 = vector.extract_strided_slice %7 {offsets = [32, 0], sizes = [8, 36], strides = [1, 1]} : vector<40x36xf32> to vector<8x36xf32>
    %13 = arith.mulf %8, %8 : vector<8x36xf32>
    %14 = arith.mulf %9, %9 : vector<8x36xf32>
    %15 = arith.mulf %8, %9 : vector<8x36xf32>
    %16 = arith.subf %10, %13 : vector<8x36xf32>
    %17 = arith.subf %11, %14 : vector<8x36xf32>
    %18 = arith.subf %12, %15 : vector<8x36xf32>
    %cst_5 = arith.constant 2.000000e+00 : f32
    %19 = vector.broadcast %cst_5 : f32 to vector<8x36xf32>
    %20 = arith.mulf %19, %15 : vector<8x36xf32>
    %cst_6 = arith.constant 9.99999974E-5 : f32
    %21 = vector.broadcast %cst_6 : f32 to vector<8x36xf32>
    %22 = arith.addf %20, %21 : vector<8x36xf32>
    %cst_7 = arith.constant 2.000000e+00 : f32
    %23 = vector.broadcast %cst_7 : f32 to vector<8x36xf32>
    %24 = arith.mulf %23, %18 : vector<8x36xf32>
    %cst_8 = arith.constant 8.99999984E-4 : f32
    %25 = vector.broadcast %cst_8 : f32 to vector<8x36xf32>
    %26 = arith.addf %24, %25 : vector<8x36xf32>
    %27 = arith.mulf %22, %26 : vector<8x36xf32>
    %28 = arith.addf %13, %14 : vector<8x36xf32>
    %cst_9 = arith.constant 9.99999974E-5 : f32
    %29 = vector.broadcast %cst_9 : f32 to vector<8x36xf32>
    %30 = arith.addf %28, %29 : vector<8x36xf32>
    %31 = arith.addf %16, %17 : vector<8x36xf32>
    %cst_10 = arith.constant 8.99999984E-4 : f32
    %32 = vector.broadcast %cst_10 : f32 to vector<8x36xf32>
    %33 = arith.addf %31, %32 : vector<8x36xf32>
    %34 = arith.mulf %30, %33 : vector<8x36xf32>
    %35 = tpu.reciprocal %34 : vector<8x36xf32> -> vector<8x36xf32>
    %36 = arith.mulf %27, %35 : vector<8x36xf32>
    %37 = tpu.iota {dimensions = array<i32: 0>} : vector<8x36xi32>
    %c6_i32 = arith.constant 6 : i32
    %38 = vector.broadcast %c6_i32 : i32 to vector<8x36xi32>
    %39 = arith.cmpi slt, %37, %38 : vector<8x36xi32>
    %cst_11 = arith.constant 0.000000e+00 : f32
    %40 = vector.broadcast %cst_11 : f32 to vector<8x36xf32>
    %41 = arith.select %39, %36, %40 : vector<8x36xi1>, vector<8x36xf32>
    %42 = vector.shape_cast %41 : vector<8x36xf32> to vector<1x8x36xf32>
    %cst_12 = arith.constant dense<0.000000e+00> : vector<1xf32>
    %43 = vector.multi_reduction <add>, %42, %cst_12 [1, 2] : vector<1x8x36xf32> to vector<1xf32>
    %44 = vector.shape_cast %43 : vector<1xf32> to vector<1x1x1xf32>
    %45 = vector.extract %44[0, 0, 0] : f32 from vector<1x1x1xf32>
    %cst_13 = arith.constant 0.00462962966 : f32
    %46 = arith.mulf %45, %cst_13 : f32
    %cst_14 = arith.constant 1.000000e+00 : f32
    %47 = arith.subf %cst_14, %46 : f32
    %c0_15 = arith.constant 0 : index
    %48 = memref.load %arg4[%c0_15] : memref<2xf32, #tpu.memory_space<smem>>
    memref.store %47, %arg4[%c0_15] : memref<2xf32, #tpu.memory_space<smem>>
    %c0_16 = arith.constant 0 : index
    %c0_17 = arith.constant 0 : index
    %49 = vector.load %arg3[%c0_16, %c0_17] : memref<2x512xf32, #tpu.memory_space<vmem>>, vector<2x512xf32>
    %cst_18 = arith.constant dense<0.000000e+00> : vector<2x2xf32>
    %50 = tpu.matmul %49, %49, %cst_18 {dimension_numbers = #tpu.dot_dimension_numbers<[1], [1], [0], [0], [0, 0, 1, 0], [], []>, precision = #tpu.contract_precision<fp32>} : vector<2x512xf32>, vector<2x512xf32>, vector<2x2xf32> -> vector<2x2xf32>
    %51 = tpu.iota {dimensions = array<i32: 0>} : vector<2x2xi32>
    %52 = tpu.iota {dimensions = array<i32: 1>} : vector<2x2xi32>
    %c0_i32 = arith.constant 0 : i32
    %53 = vector.broadcast %c0_i32 : i32 to vector<2x2xi32>
    %54 = arith.cmpi eq, %51, %53 : vector<2x2xi32>
    %c1_i32 = arith.constant 1 : i32
    %55 = vector.broadcast %c1_i32 : i32 to vector<2x2xi32>
    %56 = arith.cmpi eq, %52, %55 : vector<2x2xi32>
    %57 = arith.andi %54, %56 : vector<2x2xi1>
    %cst_19 = arith.constant 0.000000e+00 : f32
    %58 = vector.broadcast %cst_19 : f32 to vector<2x2xf32>
    %59 = arith.select %57, %50, %58 : vector<2x2xi1>, vector<2x2xf32>
    %60 = vector.shape_cast %59 : vector<2x2xf32> to vector<1x2x2xf32>
    %cst_20 = arith.constant dense<0.000000e+00> : vector<1xf32>
    %61 = vector.multi_reduction <add>, %60, %cst_20 [1, 2] : vector<1x2x2xf32> to vector<1xf32>
    %62 = vector.shape_cast %61 : vector<1xf32> to vector<1x1x1xf32>
    %63 = vector.extract %62[0, 0, 0] : f32 from vector<1x1x1xf32>
    %c0_i32_21 = arith.constant 0 : i32
    %64 = vector.broadcast %c0_i32_21 : i32 to vector<2x2xi32>
    %65 = arith.cmpi eq, %51, %64 : vector<2x2xi32>
    %c0_i32_22 = arith.constant 0 : i32
    %66 = vector.broadcast %c0_i32_22 : i32 to vector<2x2xi32>
    %67 = arith.cmpi eq, %52, %66 : vector<2x2xi32>
    %68 = arith.andi %65, %67 : vector<2x2xi1>
    %cst_23 = arith.constant 0.000000e+00 : f32
    %69 = vector.broadcast %cst_23 : f32 to vector<2x2xf32>
    %70 = arith.select %68, %50, %69 : vector<2x2xi1>, vector<2x2xf32>
    %71 = vector.shape_cast %70 : vector<2x2xf32> to vector<1x2x2xf32>
    %cst_24 = arith.constant dense<0.000000e+00> : vector<1xf32>
    %72 = vector.multi_reduction <add>, %71, %cst_24 [1, 2] : vector<1x2x2xf32> to vector<1xf32>
    %73 = vector.shape_cast %72 : vector<1xf32> to vector<1x1x1xf32>
    %74 = vector.extract %73[0, 0, 0] : f32 from vector<1x1x1xf32>
    %cst_25 = arith.constant 1.000000e-16 : f32
    %75 = arith.maximumf %74, %cst_25 : f32
    %c1_i32_26 = arith.constant 1 : i32
    %76 = vector.broadcast %c1_i32_26 : i32 to vector<2x2xi32>
    %77 = arith.cmpi eq, %51, %76 : vector<2x2xi32>
    %c1_i32_27 = arith.constant 1 : i32
    %78 = vector.broadcast %c1_i32_27 : i32 to vector<2x2xi32>
    %79 = arith.cmpi eq, %52, %78 : vector<2x2xi32>
    %80 = arith.andi %77, %79 : vector<2x2xi1>
    %cst_28 = arith.constant 0.000000e+00 : f32
    %81 = vector.broadcast %cst_28 : f32 to vector<2x2xf32>
    %82 = arith.select %80, %50, %81 : vector<2x2xi1>, vector<2x2xf32>
    %83 = vector.shape_cast %82 : vector<2x2xf32> to vector<1x2x2xf32>
    %cst_29 = arith.constant dense<0.000000e+00> : vector<1xf32>
    %84 = vector.multi_reduction <add>, %83, %cst_29 [1, 2] : vector<1x2x2xf32> to vector<1xf32>
    %85 = vector.shape_cast %84 : vector<1xf32> to vector<1x1x1xf32>
    %86 = vector.extract %85[0, 0, 0] : f32 from vector<1x1x1xf32>
    %cst_30 = arith.constant 1.000000e-16 : f32
    %87 = arith.maximumf %86, %cst_30 : f32
    %88 = arith.mulf %75, %87 : f32
    %89 = math.rsqrt %88 : f32
    %90 = arith.mulf %63, %89 : f32
    %cst_31 = arith.constant 1.000000e+00 : f32
    %91 = arith.addf %90, %cst_31 : f32
    %cst_32 = arith.constant 2.000000e+00 : f32
    %92 = arith.divf %91, %cst_32 : f32
    %cst_33 = arith.constant 1.000000e+00 : f32
    %93 = arith.subf %cst_33, %92 : f32
    %94 = arith.mulf %93, %93 : f32
    %cst_34 = arith.constant 1.000000e+01 : f32
    %95 = arith.mulf %94, %cst_34 : f32
    %c1 = arith.constant 1 : index
    %96 = memref.load %arg4[%c1] : memref<2xf32, #tpu.memory_space<smem>>
    memref.store %95, %arg4[%c1] : memref<2xf32, #tpu.memory_space<smem>>
    return
  }
}

</mosaic_0001>

<llo_original>
// kernel: style_transfer_loss.1
$region0: #{style_transfer_loss.1}
  #allocation0 [shape = 'u32[]', space=smem, size = 0x4, offset = 0x4, fixed_abs, tag = 'smem constant byte address 0x4 - core index']
  #allocation1 [shape = 'u32[72,128]{1,0:T(1,128)}', space=vmem, size = 0x9000, scoped, tag = 'internal scratch']
  %s0 = inlined_call_operand.vmem [shape: f32[8,256], index: 0, kind: input, shape index: {}]
  %s1 = inlined_call_operand.vmem [shape: f32[8,256], index: 1, kind: input, shape index: {}]
  %s2 = inlined_call_operand.hbm [shape: f32[256,36], index: 2, kind: input, shape index: {}]
  %s3 = inlined_call_operand.vmem [shape: f32[2,512], index: 3, kind: input, shape index: {}]
  %s4 = inlined_call_operand.vmem [shape: f32[2], index: 4, kind: output, shape index: {}]
  %s5 = sld [smem:[#allocation0]]
  $region30: #{style_transfer_loss.1} parent=0
    _
  %s7 = ssub.s32 1, %s5
  %s8 = scalar_select 0, %s7, %s5
  $region1: #{style_transfer_loss.1} parent=0
    #allocation2 [shape = 'u8[131072]{0}', space=vmem, size = 0x20000, scoped, tag = 'input window, operand 2, single buffered']
    #allocation3 [shape = 's32[1]{0}', space=sflag, size = 0x4, scoped, tag = 'scoped memory for style_transfer_loss.1']
    #allocation4 [shape = 's32[1]{0}', space=sflag, size = 0x4, scoped, tag = 'scoped memory for style_transfer_loss.1']
    #allocation5 [shape = 'u8[512]{0}', space=smem, size = 0x200, scoped, tag = 'output window, operand 0, single buffered']
    %9 = vsyncpa [#allocation3], 0
    %10 = vsyncpa [#allocation4], 0
    // Predicated region
    $region2: #{style_transfer_loss.1} parent=1 // pred_check
      _
    $region3: #{style_transfer_loss.1} parent=1 // pred_check_branch
      %12 = sbr.rel (0) target = $region5
    $region4: #{style_transfer_loss.1} parent=1 // pred_region
      _
    $region5: #{style_transfer_loss.1} parent=1 // pred_fallthru
      _
    // Predicated region
    $region6: #{style_transfer_loss.1} parent=1 // pred_check
      _
    $region7: #{style_transfer_loss.1} parent=1 // pred_check_branch
      %14 = sbr.rel (0) target = $region9
    $region8: #{style_transfer_loss.1} parent=1 // pred_region
      _
    $region9: #{style_transfer_loss.1} parent=1 // pred_fallthru
      _
    // Predicated region
    $region10: #{style_transfer_loss.1} parent=1 // pred_check
      _
    $region11: #{style_transfer_loss.1} parent=1 // pred_check_branch
      %16 = sbr.rel (0) target = $region13
    $region12: #{style_transfer_loss.1} parent=1 // pred_region
      %18 = vsyncadd [#allocation3], 0
      %s19 = sshll.u32 %s2, 4
      %s20 = int_to_ptr.hbm [resolvable:$true] %s19
      %s21 = sshll.u32 [#allocation2], 4
      %s22 = int_to_ptr.vmem [resolvable:$true] %s21
      %27 = dma.hbm_to_vmem [thread:$0]  %s20, 4096, %s22, [#allocation3], 128, 128, 8
    $region13: #{style_transfer_loss.1} parent=1 // pred_fallthru
      _
    // Predicated region
    $region14: #{style_transfer_loss.1} parent=1 // pred_check
      _
    $region15: #{style_transfer_loss.1} parent=1 // pred_check_branch
      %29 = sbr.rel (0) target = $region17
    $region16: #{style_transfer_loss.1} parent=1 // pred_region
      _
    $region17: #{style_transfer_loss.1} parent=1 // pred_fallthru
      _
    // Predicated region
    $region18: #{style_transfer_loss.1} parent=1 // pred_check
      _
    $region19: #{style_transfer_loss.1} parent=1 // pred_check_branch
      %31 = sbr.rel (0) target = $region21
    $region20: #{style_transfer_loss.1} parent=1 // pred_region
      %33 = dma.done [#allocation3], 4096
    $region21: #{style_transfer_loss.1} parent=1 // pred_fallthru
      _
    %v34 = vld [vmem:[%s0] sm:$0xff]
    %v35 = vld [vmem:[%s0 + $0x8] sm:$0xff]
    %v36 = vld [vmem:[%s1] sm:$0xff]
    %v37 = vld [vmem:[%s1 + $0x8] sm:$0xff]
    %v38 = vmul.f32 %v34, %v34
    %v39 = vmul.f32 %v35, %v35
    %v40 = vmul.f32 %v36, %v36
    %v41 = vmul.f32 %v37, %v37
    %v42 = vmul.f32 %v34, %v36
    %v43 = vmul.f32 %v35, %v37
    %v44 = vld [vmem:[#allocation2] sm:$0xff]
    %v45 = vld [vmem:[#allocation2 + $0x8] sm:$0xff]
    %v46 = vld [vmem:[#allocation2 + $0x10] sm:$0xff]
    %v47 = vld [vmem:[#allocation2 + $0x18] sm:$0xff]
    %v48 = vld [vmem:[#allocation2 + $0x20] sm:$0xff]
    %v49 = vld [vmem:[#allocation2 + $0x28] sm:$0xff]
    %v50 = vld [vmem:[#allocation2 + $0x30] sm:$0xff]
    %v51 = vld [vmem:[#allocation2 + $0x38] sm:$0xff]
    %v52 = vld [vmem:[#allocation2 + $0x40] sm:$0xff]
    %v53 = vld [vmem:[#allocation2 + $0x48] sm:$0xff]
    %v54 = vld [vmem:[#allocation2 + $0x50] sm:$0xff]
    %v55 = vld [vmem:[#allocation2 + $0x58] sm:$0xff]
    %v56 = vld [vmem:[#allocation2 + $0x60] sm:$0xff]
    %v57 = vld [vmem:[#allocation2 + $0x68] sm:$0xff]
    %v58 = vld [vmem:[#allocation2 + $0x70] sm:$0xff]
    %v59 = vld [vmem:[#allocation2 + $0x78] sm:$0xff]
    %v60 = vld [vmem:[#allocation2 + $0x80] sm:$0xff]
    %v61 = vld [vmem:[#allocation2 + $0x88] sm:$0xff]
    %v62 = vld [vmem:[#allocation2 + $0x90] sm:$0xff]
    %v63 = vld [vmem:[#allocation2 + $0x98] sm:$0xff]
    %v64 = vld [vmem:[#allocation2 + $0xa0] sm:$0xff]
    %v65 = vld [vmem:[#allocation2 + $0xa8] sm:$0xff]
    %v66 = vld [vmem:[#allocation2 + $0xb0] sm:$0xff]
    %v67 = vld [vmem:[#allocation2 + $0xb8] sm:$0xff]
    %v68 = vld [vmem:[#allocation2 + $0xc0] sm:$0xff]
    %v69 = vld [vmem:[#allocation2 + $0xc8] sm:$0xff]
    %v70 = vld [vmem:[#allocation2 + $0xd0] sm:$0xff]
    %v71 = vld [vmem:[#allocation2 + $0xd8] sm:$0xff]
    %v72 = vld [vmem:[#allocation2 + $0xe0] sm:$0xff]
    %v73 = vld [vmem:[#allocation2 + $0xe8] sm:$0xff]
    %v74 = vld [vmem:[#allocation2 + $0xf0] sm:$0xff]
    %v75 = vld [vmem:[#allocation2 + $0xf8] sm:$0xff]
    %v76 = vand.u32 %v59, 4294901760
    %77 = vmatpush.msra.mxu0 %v76
    %v78 = vand.u32 %v58, 4294901760
    %79 = vmatpush.msra.mxu0 %v78
    %v80 = vand.u32 %v57, 4294901760
    %81 = vmatpush.msra.mxu0 %v80
    %v82 = vand.u32 %v56, 4294901760
    %83 = vmatpush.msra.mxu0 %v82
    %v84 = vand.u32 %v55, 4294901760
    %85 = vmatpush.msra.mxu0 %v84
    %v86 = vand.u32 %v54, 4294901760
    %87 = vmatpush.msra.mxu0 %v86
    %v88 = vand.u32 %v53, 4294901760
    %89 = vmatpush.msra.mxu0 %v88
    %v90 = vand.u32 %v52, 4294901760
    %91 = vmatpush.msra.mxu0 %v90
    %v92 = vand.u32 %v51, 4294901760
    %93 = vmatpush.msra.mxu0 %v92
    %v94 = vand.u32 %v50, 4294901760
    %95 = vmatpush.msra.mxu0 %v94
    %v96 = vand.u32 %v49, 4294901760
    %97 = vmatpush.msra.mxu0 %v96
    %v98 = vand.u32 %v48, 4294901760
    %99 = vmatpush.msra.mxu0 %v98
    %v100 = vand.u32 %v47, 4294901760
    %101 = vmatpush.msra.mxu0 %v100
    %v102 = vand.u32 %v46, 4294901760
    %103 = vmatpush.msra.mxu0 %v102
    %v104 = vand.u32 %v45, 4294901760
    %105 = vmatpush.msra.mxu0 %v104
    %v106 = vand.u32 %v44, 4294901760
    %107 = vmatpush.msra.mxu0 %v106
    %v108 = vand.u32 %v34, 4294901760
    %v109 = vsub.f32 %v34, %v108
    %v110 = vand.u32 %v109, 4294901760
    %v111 = vsub.f32 %v109, %v110
    %v112 = vand.u32 %v111, 4294901760
    %113 = vmatmul.f32.gmra.mxu0 %v112
    %v114 = vpop.f32.mrf.mxu0
    %v115 = vadd.f32 0.0, %v114
    %v116 = vand.u32 %v36, 4294901760
    %v117 = vsub.f32 %v36, %v116
    %v118 = vand.u32 %v117, 4294901760
    %v119 = vsub.f32 %v117, %v118
    %v120 = vand.u32 %v119, 4294901760
    %121 = vmatmul.f32.gmra.mxu0 %v120
    %v122 = vpop.f32.mrf.mxu0
    %v123 = vadd.f32 0.0, %v122
    %v124 = vand.u32 %v38, 4294901760
    %v125 = vsub.f32 %v38, %v124
    %v126 = vand.u32 %v125, 4294901760
    %v127 = vsub.f32 %v125, %v126
    %v128 = vand.u32 %v127, 4294901760
    %129 = vmatmul.f32.gmra.mxu0 %v128
    %v130 = vpop.f32.mrf.mxu0
    %v131 = vadd.f32 0.0, %v130
    %v132 = vand.u32 %v40, 4294901760
    %v133 = vsub.f32 %v40, %v132
    %v134 = vand.u32 %v133, 4294901760
    %v135 = vsub.f32 %v133, %v134
    %v136 = vand.u32 %v135, 4294901760
    %137 = vmatmul.f32.gmra.mxu0 %v136
    %v138 = vpop.f32.mrf.mxu0
    %v139 = vadd.f32 0.0, %v138
    %v140 = vand.u32 %v42, 4294901760
    %v141 = vsub.f32 %v42, %v140
    %v142 = vand.u32 %v141, 4294901760
    %v143 = vsub.f32 %v141, %v142
    %v144 = vand.u32 %v143, 4294901760
    %145 = vmatmul.f32.gmra.mxu0 %v144
    %v146 = vpop.f32.mrf.mxu0
    %v147 = vadd.f32 0.0, %v146
    %148 = vdwg.mxu0
    %v149 = vand.u32 %v59, 4294901760
    %v150 = vsub.f32 %v59, %v149
    %v151 = vand.u32 %v150, 4294901760
    %v152 = vsub.f32 %v150, %v151
    %v153 = vand.u32 %v152, 4294901760
    %154 = vmatpush.msra.mxu0 %v153
    %v155 = vand.u32 %v58, 4294901760
    %v156 = vsub.f32 %v58, %v155
    %v157 = vand.u32 %v156, 4294901760
    %v158 = vsub.f32 %v156, %v157
    %v159 = vand.u32 %v158, 4294901760
    %160 = vmatpush.msra.mxu0 %v159
    %v161 = vand.u32 %v57, 4294901760
    %v162 = vsub.f32 %v57, %v161
    %v163 = vand.u32 %v162, 4294901760
    %v164 = vsub.f32 %v162, %v163
    %v165 = vand.u32 %v164, 4294901760
    %166 = vmatpush.msra.mxu0 %v165
    %v167 = vand.u32 %v56, 4294901760
    %v168 = vsub.f32 %v56, %v167
    %v169 = vand.u32 %v168, 4294901760
    %v170 = vsub.f32 %v168, %v169
    %v171 = vand.u32 %v170, 4294901760
    %172 = vmatpush.msra.mxu0 %v171
    %v173 = vand.u32 %v55, 4294901760
    %v174 = vsub.f32 %v55, %v173
    %v175 = vand.u32 %v174, 4294901760
    %v176 = vsub.f32 %v174, %v175
    %v177 = vand.u32 %v176, 4294901760
    %178 = vmatpush.msra.mxu0 %v177
    %v179 = vand.u32 %v54, 4294901760
    %v180 = vsub.f32 %v54, %v179
    %v181 = vand.u32 %v180, 4294901760
    %v182 = vsub.f32 %v180, %v181
    %v183 = vand.u32 %v182, 4294901760
    %184 = vmatpush.msra.mxu0 %v183
    %v185 = vand.u32 %v53, 4294901760
    %v186 = vsub.f32 %v53, %v185
    %v187 = vand.u32 %v186, 4294901760
    %v188 = vsub.f32 %v186, %v187
    %v189 = vand.u32 %v188, 4294901760
    %190 = vmatpush.msra.mxu0 %v189
    %v191 = vand.u32 %v52, 4294901760
    %v192 = vsub.f32 %v52, %v191
    %v193 = vand.u32 %v192, 4294901760
    %v194 = vsub.f32 %v192, %v193
    %v195 = vand.u32 %v194, 4294901760
    %196 = vmatpush.msra.mxu0 %v195
    %v197 = vand.u32 %v51, 4294901760
    %v198 = vsub.f32 %v51, %v197
    %v199 = vand.u32 %v198, 4294901760
    %v200 = vsub.f32 %v198, %v199
    %v201 = vand.u32 %v200, 4294901760
    %202 = vmatpush.msra.mxu0 %v201
    %v203 = vand.u32 %v50, 4294901760
    %v204 = vsub.f32 %v50, %v203
    %v205 = vand.u32 %v204, 4294901760
    %v206 = vsub.f32 %v204, %v205
    %v207 = vand.u32 %v206, 4294901760
    %208 = vmatpush.msra.mxu0 %v207
    %v209 = vand.u32 %v49, 4294901760
    %v210 = vsub.f32 %v49, %v209
    %v211 = vand.u32 %v210, 4294901760
    %v212 = vsub.f32 %v210, %v211
    %v213 = vand.u32 %v212, 4294901760
    %214 = vmatpush.msra.mxu0 %v213
    %v215 = vand.u32 %v48, 4294901760
    %v216 = vsub.f32 %v48, %v215
    %v217 = vand.u32 %v216, 4294901760
    %v218 = vsub.f32 %v216, %v217
    %v219 = vand.u32 %v218, 4294901760
    %220 = vmatpush.msra.mxu0 %v219
    %v221 = vand.u32 %v47, 4294901760
    %v222 = vsub.f32 %v47, %v221
    %v223 = vand.u32 %v222, 4294901760
    %v224 = vsub.f32 %v222, %v223
    %v225 = vand.u32 %v224, 4294901760
    %226 = vmatpush.msra.mxu0 %v225
    %v227 = vand.u32 %v46, 4294901760
    %v228 = vsub.f32 %v46, %v227
    %v229 = vand.u32 %v228, 4294901760
    %v230 = vsub.f32 %v228, %v229
    %v231 = vand.u32 %v230, 4294901760
    %232 = vmatpush.msra.mxu0 %v231
    %v233 = vand.u32 %v45, 4294901760
    %v234 = vsub.f32 %v45, %v233
    %v235 = vand.u32 %v234, 4294901760
    %v236 = vsub.f32 %v234, %v235
    %v237 = vand.u32 %v236, 4294901760
    %238 = vmatpush.msra.mxu0 %v237
    %v239 = vand.u32 %v44, 4294901760
    %v240 = vsub.f32 %v44, %v239
    %v241 = vand.u32 %v240, 4294901760
    %v242 = vsub.f32 %v240, %v241
    %v243 = vand.u32 %v242, 4294901760
    %244 = vmatpush.msra.mxu0 %v243
    %v245 = vand.u32 %v34, 4294901760
    %246 = vmatmul.f32.gmra.mxu0 %v245
    %v247 = vpop.f32.mrf.mxu0
    %v248 = vadd.f32 %v115, %v247
    %v249 = vand.u32 %v36, 4294901760
    %250 = vmatmul.f32.gmra.mxu0 %v249
    %v251 = vpop.f32.mrf.mxu0
    %v252 = vadd.f32 %v123, %v251
    %v253 = vand.u32 %v38, 4294901760
    %254 = vmatmul.f32.gmra.mxu0 %v253
    %v255 = vpop.f32.mrf.mxu0
    %v256 = vadd.f32 %v131, %v255
    %v257 = vand.u32 %v40, 4294901760
    %258 = vmatmul.f32.gmra.mxu0 %v257
    %v259 = vpop.f32.mrf.mxu0
    %v260 = vadd.f32 %v139, %v259
    %v261 = vand.u32 %v42, 4294901760
    %262 = vmatmul.f32.gmra.mxu0 %v261
    %v263 = vpop.f32.mrf.mxu0
    %v264 = vadd.f32 %v147, %v263
    %265 = vdwg.mxu0
    %v266 = vand.u32 %v59, 4294901760
    %v267 = vsub.f32 %v59, %v266
    %268 = vmatpush.msra.mxu0 %v267
    %v269 = vand.u32 %v58, 4294901760
    %v270 = vsub.f32 %v58, %v269
    %271 = vmatpush.msra.mxu0 %v270
    %v272 = vand.u32 %v57, 4294901760
    %v273 = vsub.f32 %v57, %v272
    %274 = vmatpush.msra.mxu0 %v273
    %v275 = vand.u32 %v56, 4294901760
    %v276 = vsub.f32 %v56, %v275
    %277 = vmatpush.msra.mxu0 %v276
    %v278 = vand.u32 %v55, 4294901760
    %v279 = vsub.f32 %v55, %v278
    %280 = vmatpush.msra.mxu0 %v279
    %v281 = vand.u32 %v54, 4294901760
    %v282 = vsub.f32 %v54, %v281
    %283 = vmatpush.msra.mxu0 %v282
    %v284 = vand.u32 %v53, 4294901760
    %v285 = vsub.f32 %v53, %v284
    %286 = vmatpush.msra.mxu0 %v285
    %v287 = vand.u32 %v52, 4294901760
    %v288 = vsub.f32 %v52, %v287
    %289 = vmatpush.msra.mxu0 %v288
    %v290 = vand.u32 %v51, 4294901760
    %v291 = vsub.f32 %v51, %v290
    %292 = vmatpush.msra.mxu0 %v291
    %v293 = vand.u32 %v50, 4294901760
    %v294 = vsub.f32 %v50, %v293
    %295 = vmatpush.msra.mxu0 %v294
    %v296 = vand.u32 %v49, 4294901760
    %v297 = vsub.f32 %v49, %v296
    %298 = vmatpush.msra.mxu0 %v297
    %v299 = vand.u32 %v48, 4294901760
    %v300 = vsub.f32 %v48, %v299
    %301 = vmatpush.msra.mxu0 %v300
    %v302 = vand.u32 %v47, 4294901760
    %v303 = vsub.f32 %v47, %v302
    %304 = vmatpush.msra.mxu0 %v303
    %v305 = vand.u32 %v46, 4294901760
    %v306 = vsub.f32 %v46, %v305
    %307 = vmatpush.msra.mxu0 %v306
    %v308 = vand.u32 %v45, 4294901760
    %v309 = vsub.f32 %v45, %v308
    %310 = vmatpush.msra.mxu0 %v309
    %v311 = vand.u32 %v44, 4294901760
    %v312 = vsub.f32 %v44, %v311
    %313 = vmatpush.msra.mxu0 %v312
    %v314 = vand.u32 %v34, 4294901760
    %v315 = vsub.f32 %v34, %v314
    %316 = vmatmul.f32.gmra.mxu0 %v315
    %v317 = vpop.f32.mrf.mxu0
    %v318 = vadd.f32 %v248, %v317
    %v319 = vand.u32 %v36, 4294901760
    %v320 = vsub.f32 %v36, %v319
    %321 = vmatmul.f32.gmra.mxu0 %v320
    %v322 = vpop.f32.mrf.mxu0
    %v323 = vadd.f32 %v252, %v322
    %v324 = vand.u32 %v38, 4294901760
    %v325 = vsub.f32 %v38, %v324
    %326 = vmatmul.f32.gmra.mxu0 %v325
    %v327 = vpop.f32.mrf.mxu0
    %v328 = vadd.f32 %v256, %v327
    %v329 = vand.u32 %v40, 4294901760
    %v330 = vsub.f32 %v40, %v329
    %331 = vmatmul.f32.gmra.mxu0 %v330
    %v332 = vpop.f32.mrf.mxu0
    %v333 = vadd.f32 %v260, %v332
    %v334 = vand.u32 %v42, 4294901760
    %v335 = vsub.f32 %v42, %v334
    %336 = vmatmul.f32.gmra.mxu0 %v335
    %v337 = vpop.f32.mrf.mxu0
    %v338 = vadd.f32 %v264, %v337
    %339 = vdwg.mxu0
    %v340 = vand.u32 %v59, 4294901760
    %341 = vmatpush.msra.mxu0 %v340
    %v342 = vand.u32 %v58, 4294901760
    %343 = vmatpush.msra.mxu0 %v342
    %v344 = vand.u32 %v57, 4294901760
    %345 = vmatpush.msra.mxu0 %v344
    %v346 = vand.u32 %v56, 4294901760
    %347 = vmatpush.msra.mxu0 %v346
    %v348 = vand.u32 %v55, 4294901760
    %349 = vmatpush.msra.mxu0 %v348
    %v350 = vand.u32 %v54, 4294901760
    %351 = vmatpush.msra.mxu0 %v350
    %v352 = vand.u32 %v53, 4294901760
    %353 = vmatpush.msra.mxu0 %v352
    %v354 = vand.u32 %v52, 4294901760
    %355 = vmatpush.msra.mxu0 %v354
    %v356 = vand.u32 %v51, 4294901760
    %357 = vmatpush.msra.mxu0 %v356
    %v358 = vand.u32 %v50, 4294901760
    %359 = vmatpush.msra.mxu0 %v358
    %v360 = vand.u32 %v49, 4294901760
    %361 = vmatpush.msra.mxu0 %v360
    %v362 = vand.u32 %v48, 4294901760
    %363 = vmatpush.msra.mxu0 %v362
    %v364 = vand.u32 %v47, 4294901760
    %365 = vmatpush.msra.mxu0 %v364
    %v366 = vand.u32 %v46, 4294901760
    %367 = vmatpush.msra.mxu0 %v366
    %v368 = vand.u32 %v45, 4294901760
    %369 = vmatpush.msra.mxu0 %v368
    %v370 = vand.u32 %v44, 4294901760
    %371 = vmatpush.msra.mxu0 %v370
    %v372 = vand.u32 %v34, 4294901760
    %v373 = vsub.f32 %v34, %v372
    %v374 = vand.u32 %v373, 4294901760
    %375 = vmatmul.f32.gmra.mxu0 %v374
    %v376 = vpop.f32.mrf.mxu0
    %v377 = vadd.f32 %v318, %v376
    %v378 = vand.u32 %v36, 4294901760
    %v379 = vsub.f32 %v36, %v378
    %v380 = vand.u32 %v379, 4294901760
    %381 = vmatmul.f32.gmra.mxu0 %v380
    %v382 = vpop.f32.mrf.mxu0
    %v383 = vadd.f32 %v323, %v382
    %v384 = vand.u32 %v38, 4294901760
    %v385 = vsub.f32 %v38, %v384
    %v386 = vand.u32 %v385, 4294901760
    %387 = vmatmul.f32.gmra.mxu0 %v386
    %v388 = vpop.f32.mrf.mxu0
    %v389 = vadd.f32 %v328, %v388
    %v390 = vand.u32 %v40, 4294901760
    %v391 = vsub.f32 %v40, %v390
    %v392 = vand.u32 %v391, 4294901760
    %393 = vmatmul.f32.gmra.mxu0 %v392
    %v394 = vpop.f32.mrf.mxu0
    %v395 = vadd.f32 %v333, %v394
    %v396 = vand.u32 %v42, 4294901760
    %v397 = vsub.f32 %v42, %v396
    %v398 = vand.u32 %v397, 4294901760
    %399 = vmatmul.f32.gmra.mxu0 %v398
    %v400 = vpop.f32.mrf.mxu0
    %v401 = vadd.f32 %v338, %v400
    %402 = vdwg.mxu0
    %v403 = vand.u32 %v59, 4294901760
    %v404 = vsub.f32 %v59, %v403
    %v405 = vand.u32 %v404, 4294901760
    %406 = vmatpush.msra.mxu0 %v405
    %v407 = vand.u32 %v58, 4294901760
    %v408 = vsub.f32 %v58, %v407
    %v409 = vand.u32 %v408, 4294901760
    %410 = vmatpush.msra.mxu0 %v409
    %v411 = vand.u32 %v57, 4294901760
    %v412 = vsub.f32 %v57, %v411
    %v413 = vand.u32 %v412, 4294901760
    %414 = vmatpush.msra.mxu0 %v413
    %v415 = vand.u32 %v56, 4294901760
    %v416 = vsub.f32 %v56, %v415
    %v417 = vand.u32 %v416, 4294901760
    %418 = vmatpush.msra.mxu0 %v417
    %v419 = vand.u32 %v55, 4294901760
    %v420 = vsub.f32 %v55, %v419
    %v421 = vand.u32 %v420, 4294901760
    %422 = vmatpush.msra.mxu0 %v421
    %v423 = vand.u32 %v54, 4294901760
    %v424 = vsub.f32 %v54, %v423
    %v425 = vand.u32 %v424, 4294901760
    %426 = vmatpush.msra.mxu0 %v425
    %v427 = vand.u32 %v53, 4294901760
    %v428 = vsub.f32 %v53, %v427
    %v429 = vand.u32 %v428, 4294901760
    %430 = vmatpush.msra.mxu0 %v429
    %v431 = vand.u32 %v52, 4294901760
    %v432 = vsub.f32 %v52, %v431
    %v433 = vand.u32 %v432, 4294901760
    %434 = vmatpush.msra.mxu0 %v433
    %v435 = vand.u32 %v51, 4294901760
    %v436 = vsub.f32 %v51, %v435
    %v437 = vand.u32 %v436, 4294901760
    %438 = vmatpush.msra.mxu0 %v437
    %v439 = vand.u32 %v50, 4294901760
    %v440 = vsub.f32 %v50, %v439
    %v441 = vand.u32 %v440, 4294901760
    %442 = vmatpush.msra.mxu0 %v441
    %v443 = vand.u32 %v49, 4294901760
    %v444 = vsub.f32 %v49, %v443
    %v445 = vand.u32 %v444, 4294901760
    %446 = vmatpush.msra.mxu0 %v445
    %v447 = vand.u32 %v48, 4294901760
    %v448 = vsub.f32 %v48, %v447
    %v449 = vand.u32 %v448, 4294901760
    %450 = vmatpush.msra.mxu0 %v449
    %v451 = vand.u32 %v47, 4294901760
    %v452 = vsub.f32 %v47, %v451
    %v453 = vand.u32 %v452, 4294901760
    %454 = vmatpush.msra.mxu0 %v453
    %v455 = vand.u32 %v46, 4294901760
    %v456 = vsub.f32 %v46, %v455
    %v457 = vand.u32 %v456, 4294901760
    %458 = vmatpush.msra.mxu0 %v457
    %v459 = vand.u32 %v45, 4294901760
    %v460 = vsub.f32 %v45, %v459
    %v461 = vand.u32 %v460, 4294901760
    %462 = vmatpush.msra.mxu0 %v461
    %v463 = vand.u32 %v44, 4294901760
    %v464 = vsub.f32 %v44, %v463
    %v465 = vand.u32 %v464, 4294901760
    %466 = vmatpush.msra.mxu0 %v465
    %v467 = vand.u32 %v34, 4294901760
    %468 = vmatmul.f32.gmra.mxu0 %v467
    %v469 = vpop.f32.mrf.mxu0
    %v470 = vadd.f32 %v377, %v469
    %v471 = vand.u32 %v36, 4294901760
    %472 = vmatmul.f32.gmra.mxu0 %v471
    %v473 = vpop.f32.mrf.mxu0
    %v474 = vadd.f32 %v383, %v473
    %v475 = vand.u32 %v38, 4294901760
    %476 = vmatmul.f32.gmra.mxu0 %v475
    %v477 = vpop.f32.mrf.mxu0
    %v478 = vadd.f32 %v389, %v477
    %v479 = vand.u32 %v40, 4294901760
    %480 = vmatmul.f32.gmra.mxu0 %v479
    %v481 = vpop.f32.mrf.mxu0
    %v482 = vadd.f32 %v395, %v481
    %v483 = vand.u32 %v42, 4294901760
    %484 = vmatmul.f32.gmra.mxu0 %v483
    %v485 = vpop.f32.mrf.mxu0
    %v486 = vadd.f32 %v401, %v485
    %487 = vdwg.mxu0
    %v488 = vand.u32 %v59, 4294901760
    %489 = vmatpush.msra.mxu0 %v488
    %v490 = vand.u32 %v58, 4294901760
    %491 = vmatpush.msra.mxu0 %v490
    %v492 = vand.u32 %v57, 4294901760
    %493 = vmatpush.msra.mxu0 %v492
    %v494 = vand.u32 %v56, 4294901760
    %495 = vmatpush.msra.mxu0 %v494
    %v496 = vand.u32 %v55, 4294901760
    %497 = vmatpush.msra.mxu0 %v496
    %v498 = vand.u32 %v54, 4294901760
    %499 = vmatpush.msra.mxu0 %v498
    %v500 = vand.u32 %v53, 4294901760
    %501 = vmatpush.msra.mxu0 %v500
    %v502 = vand.u32 %v52, 4294901760
    %503 = vmatpush.msra.mxu0 %v502
    %v504 = vand.u32 %v51, 4294901760
    %505 = vmatpush.msra.mxu0 %v504
    %v506 = vand.u32 %v50, 4294901760
    %507 = vmatpush.msra.mxu0 %v506
    %v508 = vand.u32 %v49, 4294901760
    %509 = vmatpush.msra.mxu0 %v508
    %v510 = vand.u32 %v48, 4294901760
    %511 = vmatpush.msra.mxu0 %v510
    %v512 = vand.u32 %v47, 4294901760
    %513 = vmatpush.msra.mxu0 %v512
    %v514 = vand.u32 %v46, 4294901760
    %515 = vmatpush.msra.mxu0 %v514
    %v516 = vand.u32 %v45, 4294901760
    %517 = vmatpush.msra.mxu0 %v516
    %v518 = vand.u32 %v44, 4294901760
    %519 = vmatpush.msra.mxu0 %v518
    %v520 = vand.u32 %v34, 4294901760
    %521 = vmatmul.f32.gmra.mxu0 %v520
    %v522 = vpop.f32.mrf.mxu0
    %v523 = vadd.f32 %v470, %v522
    %v524 = vand.u32 %v36, 4294901760
    %525 = vmatmul.f32.gmra.mxu0 %v524
    %v526 = vpop.f32.mrf.mxu0
    %v527 = vadd.f32 %v474, %v526
    %v528 = vand.u32 %v38, 4294901760
    %529 = vmatmul.f32.gmra.mxu0 %v528
    %v530 = vpop.f32.mrf.mxu0
    %v531 = vadd.f32 %v478, %v530
    %v532 = vand.u32 %v40, 4294901760
    %533 = vmatmul.f32.gmra.mxu0 %v532
    %v534 = vpop.f32.mrf.mxu0
    %v535 = vadd.f32 %v482, %v534
    %v536 = vand.u32 %v42, 4294901760
    %537 = vmatmul.f32.gmra.mxu0 %v536
    %v538 = vpop.f32.mrf.mxu0
    %v539 = vadd.f32 %v486, %v538
    %540 = vdwg.mxu0
    %v541 = vand.u32 %v75, 4294901760
    %542 = vmatpush.msra.mxu0 %v541
    %v543 = vand.u32 %v74, 4294901760
    %544 = vmatpush.msra.mxu0 %v543
    %v545 = vand.u32 %v73, 4294901760
    %546 = vmatpush.msra.mxu0 %v545
    %v547 = vand.u32 %v72, 4294901760
    %548 = vmatpush.msra.mxu0 %v547
    %v549 = vand.u32 %v71, 4294901760
    %550 = vmatpush.msra.mxu0 %v549
    %v551 = vand.u32 %v70, 4294901760
    %552 = vmatpush.msra.mxu0 %v551
    %v553 = vand.u32 %v69, 4294901760
    %554 = vmatpush.msra.mxu0 %v553
    %v555 = vand.u32 %v68, 4294901760
    %556 = vmatpush.msra.mxu0 %v555
    %v557 = vand.u32 %v67, 4294901760
    %558 = vmatpush.msra.mxu0 %v557
    %v559 = vand.u32 %v66, 4294901760
    %560 = vmatpush.msra.mxu0 %v559
    %v561 = vand.u32 %v65, 4294901760
    %562 = vmatpush.msra.mxu0 %v561
    %v563 = vand.u32 %v64, 4294901760
    %564 = vmatpush.msra.mxu0 %v563
    %v565 = vand.u32 %v63, 4294901760
    %566 = vmatpush.msra.mxu0 %v565
    %v567 = vand.u32 %v62, 4294901760
    %568 = vmatpush.msra.mxu0 %v567
    %v569 = vand.u32 %v61, 4294901760
    %570 = vmatpush.msra.mxu0 %v569
    %v571 = vand.u32 %v60, 4294901760
    %572 = vmatpush.msra.mxu0 %v571
    %v573 = vand.u32 %v35, 4294901760
    %v574 = vsub.f32 %v35, %v573
    %v575 = vand.u32 %v574, 4294901760
    %v576 = vsub.f32 %v574, %v575
    %v577 = vand.u32 %v576, 4294901760
    %578 = vmatmul.f32.gmra.mxu0 %v577
    %v579 = vpop.f32.mrf.mxu0
    %v580 = vadd.f32 %v523, %v579
    %v581 = vand.u32 %v37, 4294901760
    %v582 = vsub.f32 %v37, %v581
    %v583 = vand.u32 %v582, 4294901760
    %v584 = vsub.f32 %v582, %v583
    %v585 = vand.u32 %v584, 4294901760
    %586 = vmatmul.f32.gmra.mxu0 %v585
    %v587 = vpop.f32.mrf.mxu0
    %v588 = vadd.f32 %v527, %v587
    %v589 = vand.u32 %v39, 4294901760
    %v590 = vsub.f32 %v39, %v589
    %v591 = vand.u32 %v590, 4294901760
    %v592 = vsub.f32 %v590, %v591
    %v593 = vand.u32 %v592, 4294901760
    %594 = vmatmul.f32.gmra.mxu0 %v593
    %v595 = vpop.f32.mrf.mxu0
    %v596 = vadd.f32 %v531, %v595
    %v597 = vand.u32 %v41, 4294901760
    %v598 = vsub.f32 %v41, %v597
    %v599 = vand.u32 %v598, 4294901760
    %v600 = vsub.f32 %v598, %v599
    %v601 = vand.u32 %v600, 4294901760
    %602 = vmatmul.f32.gmra.mxu0 %v601
    %v603 = vpop.f32.mrf.mxu0
    %v604 = vadd.f32 %v535, %v603
    %v605 = vand.u32 %v43, 4294901760
    %v606 = vsub.f32 %v43, %v605
    %v607 = vand.u32 %v606, 4294901760
    %v608 = vsub.f32 %v606, %v607
    %v609 = vand.u32 %v608, 4294901760
    %610 = vmatmul.f32.gmra.mxu0 %v609
    %v611 = vpop.f32.mrf.mxu0
    %v612 = vadd.f32 %v539, %v611
    %613 = vdwg.mxu0
    %v614 = vand.u32 %v75, 4294901760
    %v615 = vsub.f32 %v75, %v614
    %v616 = vand.u32 %v615, 4294901760
    %v617 = vsub.f32 %v615, %v616
    %v618 = vand.u32 %v617, 4294901760
    %619 = vmatpush.msra.mxu0 %v618
    %v620 = vand.u32 %v74, 4294901760
    %v621 = vsub.f32 %v74, %v620
    %v622 = vand.u32 %v621, 4294901760
    %v623 = vsub.f32 %v621, %v622
    %v624 = vand.u32 %v623, 4294901760
    %625 = vmatpush.msra.mxu0 %v624
    %v626 = vand.u32 %v73, 4294901760
    %v627 = vsub.f32 %v73, %v626
    %v628 = vand.u32 %v627, 4294901760
    %v629 = vsub.f32 %v627, %v628
    %v630 = vand.u32 %v629, 4294901760
    %631 = vmatpush.msra.mxu0 %v630
    %v632 = vand.u32 %v72, 4294901760
    %v633 = vsub.f32 %v72, %v632
    %v634 = vand.u32 %v633, 4294901760
    %v635 = vsub.f32 %v633, %v634
    %v636 = vand.u32 %v635, 4294901760
    %637 = vmatpush.msra.mxu0 %v636
    %v638 = vand.u32 %v71, 4294901760
    %v639 = vsub.f32 %v71, %v638
    %v640 = vand.u32 %v639, 4294901760
    %v641 = vsub.f32 %v639, %v640
    %v642 = vand.u32 %v641, 4294901760
    %643 = vmatpush.msra.mxu0 %v642
    %v644 = vand.u32 %v70, 4294901760
    %v645 = vsub.f32 %v70, %v644
    %v646 = vand.u32 %v645, 4294901760
    %v647 = vsub.f32 %v645, %v646
    %v648 = vand.u32 %v647, 4294901760
    %649 = vmatpush.msra.mxu0 %v648
    %v650 = vand.u32 %v69, 4294901760
    %v651 = vsub.f32 %v69, %v650
    %v652 = vand.u32 %v651, 4294901760
    %v653 = vsub.f32 %v651, %v652
    %v654 = vand.u32 %v653, 4294901760
    %655 = vmatpush.msra.mxu0 %v654
    %v656 = vand.u32 %v68, 4294901760
    %v657 = vsub.f32 %v68, %v656
    %v658 = vand.u32 %v657, 4294901760
    %v659 = vsub.f32 %v657, %v658
    %v660 = vand.u32 %v659, 4294901760
    %661 = vmatpush.msra.mxu0 %v660
    %v662 = vand.u32 %v67, 4294901760
    %v663 = vsub.f32 %v67, %v662
    %v664 = vand.u32 %v663, 4294901760
    %v665 = vsub.f32 %v663, %v664
    %v666 = vand.u32 %v665, 4294901760
    %667 = vmatpush.msra.mxu0 %v666
    %v668 = vand.u32 %v66, 4294901760
    %v669 = vsub.f32 %v66, %v668
    %v670 = vand.u32 %v669, 4294901760
    %v671 = vsub.f32 %v669, %v670
    %v672 = vand.u32 %v671, 4294901760
    %673 = vmatpush.msra.mxu0 %v672
    %v674 = vand.u32 %v65, 4294901760
    %v675 = vsub.f32 %v65, %v674
    %v676 = vand.u32 %v675, 4294901760
    %v677 = vsub.f32 %v675, %v676
    %v678 = vand.u32 %v677, 4294901760
    %679 = vmatpush.msra.mxu0 %v678
    %v680 = vand.u32 %v64, 4294901760
    %v681 = vsub.f32 %v64, %v680
    %v682 = vand.u32 %v681, 4294901760
    %v683 = vsub.f32 %v681, %v682
    %v684 = vand.u32 %v683, 4294901760
    %685 = vmatpush.msra.mxu0 %v684
    %v686 = vand.u32 %v63, 4294901760
    %v687 = vsub.f32 %v63, %v686
    %v688 = vand.u32 %v687, 4294901760
    %v689 = vsub.f32 %v687, %v688
    %v690 = vand.u32 %v689, 4294901760
    %691 = vmatpush.msra.mxu0 %v690
    %v692 = vand.u32 %v62, 4294901760
    %v693 = vsub.f32 %v62, %v692
    %v694 = vand.u32 %v693, 4294901760
    %v695 = vsub.f32 %v693, %v694
    %v696 = vand.u32 %v695, 4294901760
    %697 = vmatpush.msra.mxu0 %v696
    %v698 = vand.u32 %v61, 4294901760
    %v699 = vsub.f32 %v61, %v698
    %v700 = vand.u32 %v699, 4294901760
    %v701 = vsub.f32 %v699, %v700
    %v702 = vand.u32 %v701, 4294901760
    %703 = vmatpush.msra.mxu0 %v702
    %v704 = vand.u32 %v60, 4294901760
    %v705 = vsub.f32 %v60, %v704
    %v706 = vand.u32 %v705, 4294901760
    %v707 = vsub.f32 %v705, %v706
    %v708 = vand.u32 %v707, 4294901760
    %709 = vmatpush.msra.mxu0 %v708
    %v710 = vand.u32 %v35, 4294901760
    %711 = vmatmul.f32.gmra.mxu0 %v710
    %v712 = vpop.f32.mrf.mxu0
    %v713 = vadd.f32 %v580, %v712
    %v714 = vand.u32 %v37, 4294901760
    %715 = vmatmul.f32.gmra.mxu0 %v714
    %v716 = vpop.f32.mrf.mxu0
    %v717 = vadd.f32 %v588, %v716
    %v718 = vand.u32 %v39, 4294901760
    %719 = vmatmul.f32.gmra.mxu0 %v718
    %v720 = vpop.f32.mrf.mxu0
    %v721 = vadd.f32 %v596, %v720
    %v722 = vand.u32 %v41, 4294901760
    %723 = vmatmul.f32.gmra.mxu0 %v722
    %v724 = vpop.f32.mrf.mxu0
    %v725 = vadd.f32 %v604, %v724
    %v726 = vand.u32 %v43, 4294901760
    %727 = vmatmul.f32.gmra.mxu0 %v726
    %v728 = vpop.f32.mrf.mxu0
    %v729 = vadd.f32 %v612, %v728
    %730 = vdwg.mxu0
    %v731 = vand.u32 %v75, 4294901760
    %v732 = vsub.f32 %v75, %v731
    %733 = vmatpush.msra.mxu0 %v732
    %v734 = vand.u32 %v74, 4294901760
    %v735 = vsub.f32 %v74, %v734
    %736 = vmatpush.msra.mxu0 %v735
    %v737 = vand.u32 %v73, 4294901760
    %v738 = vsub.f32 %v73, %v737
    %739 = vmatpush.msra.mxu0 %v738
    %v740 = vand.u32 %v72, 4294901760
    %v741 = vsub.f32 %v72, %v740
    %742 = vmatpush.msra.mxu0 %v741
    %v743 = vand.u32 %v71, 4294901760
    %v744 = vsub.f32 %v71, %v743
    %745 = vmatpush.msra.mxu0 %v744
    %v746 = vand.u32 %v70, 4294901760
    %v747 = vsub.f32 %v70, %v746
    %748 = vmatpush.msra.mxu0 %v747
    %v749 = vand.u32 %v69, 4294901760
    %v750 = vsub.f32 %v69, %v749
    %751 = vmatpush.msra.mxu0 %v750
    %v752 = vand.u32 %v68, 4294901760
    %v753 = vsub.f32 %v68, %v752
    %754 = vmatpush.msra.mxu0 %v753
    %v755 = vand.u32 %v67, 4294901760
    %v756 = vsub.f32 %v67, %v755
    %757 = vmatpush.msra.mxu0 %v756
    %v758 = vand.u32 %v66, 4294901760
    %v759 = vsub.f32 %v66, %v758
    %760 = vmatpush.msra.mxu0 %v759
    %v761 = vand.u32 %v65, 4294901760
    %v762 = vsub.f32 %v65, %v761
    %763 = vmatpush.msra.mxu0 %v762
    %v764 = vand.u32 %v64, 4294901760
    %v765 = vsub.f32 %v64, %v764
    %766 = vmatpush.msra.mxu0 %v765
    %v767 = vand.u32 %v63, 4294901760
    %v768 = vsub.f32 %v63, %v767
    %769 = vmatpush.msra.mxu0 %v768
    %v770 = vand.u32 %v62, 4294901760
    %v771 = vsub.f32 %v62, %v770
    %772 = vmatpush.msra.mxu0 %v771
    %v773 = vand.u32 %v61, 4294901760
    %v774 = vsub.f32 %v61, %v773
    %775 = vmatpush.msra.mxu0 %v774
    %v776 = vand.u32 %v60, 4294901760
    %v777 = vsub.f32 %v60, %v776
    %778 = vmatpush.msra.mxu0 %v777
    %v779 = vand.u32 %v35, 4294901760
    %v780 = vsub.f32 %v35, %v779
    %781 = vmatmul.f32.gmra.mxu0 %v780
    %v782 = vpop.f32.mrf.mxu0
    %v783 = vadd.f32 %v713, %v782
    %v784 = vand.u32 %v37, 4294901760
    %v785 = vsub.f32 %v37, %v784
    %786 = vmatmul.f32.gmra.mxu0 %v785
    %v787 = vpop.f32.mrf.mxu0
    %v788 = vadd.f32 %v717, %v787
    %v789 = vand.u32 %v39, 4294901760
    %v790 = vsub.f32 %v39, %v789
    %791 = vmatmul.f32.gmra.mxu0 %v790
    %v792 = vpop.f32.mrf.mxu0
    %v793 = vadd.f32 %v721, %v792
    %v794 = vand.u32 %v41, 4294901760
    %v795 = vsub.f32 %v41, %v794
    %796 = vmatmul.f32.gmra.mxu0 %v795
    %v797 = vpop.f32.mrf.mxu0
    %v798 = vadd.f32 %v725, %v797
    %v799 = vand.u32 %v43, 4294901760
    %v800 = vsub.f32 %v43, %v799
    %801 = vmatmul.f32.gmra.mxu0 %v800
    %v802 = vpop.f32.mrf.mxu0
    %v803 = vadd.f32 %v729, %v802
    %804 = vdwg.mxu0
    %v805 = vand.u32 %v75, 4294901760
    %806 = vmatpush.msra.mxu0 %v805
    %v807 = vand.u32 %v74, 4294901760
    %808 = vmatpush.msra.mxu0 %v807
    %v809 = vand.u32 %v73, 4294901760
    %810 = vmatpush.msra.mxu0 %v809
    %v811 = vand.u32 %v72, 4294901760
    %812 = vmatpush.msra.mxu0 %v811
    %v813 = vand.u32 %v71, 4294901760
    %814 = vmatpush.msra.mxu0 %v813
    %v815 = vand.u32 %v70, 4294901760
    %816 = vmatpush.msra.mxu0 %v815
    %v817 = vand.u32 %v69, 4294901760
    %818 = vmatpush.msra.mxu0 %v817
    %v819 = vand.u32 %v68, 4294901760
    %820 = vmatpush.msra.mxu0 %v819
    %v821 = vand.u32 %v67, 4294901760
    %822 = vmatpush.msra.mxu0 %v821
    %v823 = vand.u32 %v66, 4294901760
    %824 = vmatpush.msra.mxu0 %v823
    %v825 = vand.u32 %v65, 4294901760
    %826 = vmatpush.msra.mxu0 %v825
    %v827 = vand.u32 %v64, 4294901760
    %828 = vmatpush.msra.mxu0 %v827
    %v829 = vand.u32 %v63, 4294901760
    %830 = vmatpush.msra.mxu0 %v829
    %v831 = vand.u32 %v62, 4294901760
    %832 = vmatpush.msra.mxu0 %v831
    %v833 = vand.u32 %v61, 4294901760
    %834 = vmatpush.msra.mxu0 %v833
    %v835 = vand.u32 %v60, 4294901760
    %836 = vmatpush.msra.mxu0 %v835
    %v837 = vand.u32 %v35, 4294901760
    %v838 = vsub.f32 %v35, %v837
    %v839 = vand.u32 %v838, 4294901760
    %840 = vmatmul.f32.gmra.mxu0 %v839
    %v841 = vpop.f32.mrf.mxu0
    %v842 = vadd.f32 %v783, %v841
    %v843 = vand.u32 %v37, 4294901760
    %v844 = vsub.f32 %v37, %v843
    %v845 = vand.u32 %v844, 4294901760
    %846 = vmatmul.f32.gmra.mxu0 %v845
    %v847 = vpop.f32.mrf.mxu0
    %v848 = vadd.f32 %v788, %v847
    %v849 = vand.u32 %v39, 4294901760
    %v850 = vsub.f32 %v39, %v849
    %v851 = vand.u32 %v850, 4294901760
    %852 = vmatmul.f32.gmra.mxu0 %v851
    %v853 = vpop.f32.mrf.mxu0
    %v854 = vadd.f32 %v793, %v853
    %v855 = vand.u32 %v41, 4294901760
    %v856 = vsub.f32 %v41, %v855
    %v857 = vand.u32 %v856, 4294901760
    %858 = vmatmul.f32.gmra.mxu0 %v857
    %v859 = vpop.f32.mrf.mxu0
    %v860 = vadd.f32 %v798, %v859
    %v861 = vand.u32 %v43, 4294901760
    %v862 = vsub.f32 %v43, %v861
    %v863 = vand.u32 %v862, 4294901760
    %864 = vmatmul.f32.gmra.mxu0 %v863
    %v865 = vpop.f32.mrf.mxu0
    %v866 = vadd.f32 %v803, %v865
    %867 = vdwg.mxu0
    %v868 = vand.u32 %v75, 4294901760
    %v869 = vsub.f32 %v75, %v868
    %v870 = vand.u32 %v869, 4294901760
    %871 = vmatpush.msra.mxu0 %v870
    %v872 = vand.u32 %v74, 4294901760
    %v873 = vsub.f32 %v74, %v872
    %v874 = vand.u32 %v873, 4294901760
    %875 = vmatpush.msra.mxu0 %v874
    %v876 = vand.u32 %v73, 4294901760
    %v877 = vsub.f32 %v73, %v876
    %v878 = vand.u32 %v877, 4294901760
    %879 = vmatpush.msra.mxu0 %v878
    %v880 = vand.u32 %v72, 4294901760
    %v881 = vsub.f32 %v72, %v880
    %v882 = vand.u32 %v881, 4294901760
    %883 = vmatpush.msra.mxu0 %v882
    %v884 = vand.u32 %v71, 4294901760
    %v885 = vsub.f32 %v71, %v884
    %v886 = vand.u32 %v885, 4294901760
    %887 = vmatpush.msra.mxu0 %v886
    %v888 = vand.u32 %v70, 4294901760
    %v889 = vsub.f32 %v70, %v888
    %v890 = vand.u32 %v889, 4294901760
    %891 = vmatpush.msra.mxu0 %v890
    %v892 = vand.u32 %v69, 4294901760
    %v893 = vsub.f32 %v69, %v892
    %v894 = vand.u32 %v893, 4294901760
    %895 = vmatpush.msra.mxu0 %v894
    %v896 = vand.u32 %v68, 4294901760
    %v897 = vsub.f32 %v68, %v896
    %v898 = vand.u32 %v897, 4294901760
    %899 = vmatpush.msra.mxu0 %v898
    %v900 = vand.u32 %v67, 4294901760
    %v901 = vsub.f32 %v67, %v900
    %v902 = vand.u32 %v901, 4294901760
    %903 = vmatpush.msra.mxu0 %v902
    %v904 = vand.u32 %v66, 4294901760
    %v905 = vsub.f32 %v66, %v904
    %v906 = vand.u32 %v905, 4294901760
    %907 = vmatpush.msra.mxu0 %v906
    %v908 = vand.u32 %v65, 4294901760
    %v909 = vsub.f32 %v65, %v908
    %v910 = vand.u32 %v909, 4294901760
    %911 = vmatpush.msra.mxu0 %v910
    %v912 = vand.u32 %v64, 4294901760
    %v913 = vsub.f32 %v64, %v912
    %v914 = vand.u32 %v913, 4294901760
    %915 = vmatpush.msra.mxu0 %v914
    %v916 = vand.u32 %v63, 4294901760
    %v917 = vsub.f32 %v63, %v916
    %v918 = vand.u32 %v917, 4294901760
    %919 = vmatpush.msra.mxu0 %v918
    %v920 = vand.u32 %v62, 4294901760
    %v921 = vsub.f32 %v62, %v920
    %v922 = vand.u32 %v921, 4294901760
    %923 = vmatpush.msra.mxu0 %v922
    %v924 = vand.u32 %v61, 4294901760
    %v925 = vsub.f32 %v61, %v924
    %v926 = vand.u32 %v925, 4294901760
    %927 = vmatpush.msra.mxu0 %v926
    %v928 = vand.u32 %v60, 4294901760
    %v929 = vsub.f32 %v60, %v928
    %v930 = vand.u32 %v929, 4294901760
    %931 = vmatpush.msra.mxu0 %v930
    %v932 = vand.u32 %v35, 4294901760
    %933 = vmatmul.f32.gmra.mxu0 %v932
    %v934 = vpop.f32.mrf.mxu0
    %v935 = vadd.f32 %v842, %v934
    %v936 = vand.u32 %v37, 4294901760
    %937 = vmatmul.f32.gmra.mxu0 %v936
    %v938 = vpop.f32.mrf.mxu0
    %v939 = vadd.f32 %v848, %v938
    %v940 = vand.u32 %v39, 4294901760
    %941 = vmatmul.f32.gmra.mxu0 %v940
    %v942 = vpop.f32.mrf.mxu0
    %v943 = vadd.f32 %v854, %v942
    %v944 = vand.u32 %v41, 4294901760
    %945 = vmatmul.f32.gmra.mxu0 %v944
    %v946 = vpop.f32.mrf.mxu0
    %v947 = vadd.f32 %v860, %v946
    %v948 = vand.u32 %v43, 4294901760
    %949 = vmatmul.f32.gmra.mxu0 %v948
    %v950 = vpop.f32.mrf.mxu0
    %v951 = vadd.f32 %v866, %v950
    %952 = vdwg.mxu0
    %v953 = vand.u32 %v75, 4294901760
    %954 = vmatpush.msra.mxu0 %v953
    %v955 = vand.u32 %v74, 4294901760
    %956 = vmatpush.msra.mxu0 %v955
    %v957 = vand.u32 %v73, 4294901760
    %958 = vmatpush.msra.mxu0 %v957
    %v959 = vand.u32 %v72, 4294901760
    %960 = vmatpush.msra.mxu0 %v959
    %v961 = vand.u32 %v71, 4294901760
    %962 = vmatpush.msra.mxu0 %v961
    %v963 = vand.u32 %v70, 4294901760
    %964 = vmatpush.msra.mxu0 %v963
    %v965 = vand.u32 %v69, 4294901760
    %966 = vmatpush.msra.mxu0 %v965
    %v967 = vand.u32 %v68, 4294901760
    %968 = vmatpush.msra.mxu0 %v967
    %v969 = vand.u32 %v67, 4294901760
    %970 = vmatpush.msra.mxu0 %v969
    %v971 = vand.u32 %v66, 4294901760
    %972 = vmatpush.msra.mxu0 %v971
    %v973 = vand.u32 %v65, 4294901760
    %974 = vmatpush.msra.mxu0 %v973
    %v975 = vand.u32 %v64, 4294901760
    %976 = vmatpush.msra.mxu0 %v975
    %v977 = vand.u32 %v63, 4294901760
    %978 = vmatpush.msra.mxu0 %v977
    %v979 = vand.u32 %v62, 4294901760
    %980 = vmatpush.msra.mxu0 %v979
    %v981 = vand.u32 %v61, 4294901760
    %982 = vmatpush.msra.mxu0 %v981
    %v983 = vand.u32 %v60, 4294901760
    %984 = vmatpush.msra.mxu0 %v983
    %v985 = vand.u32 %v35, 4294901760
    %986 = vmatmul.f32.gmra.mxu0 %v985
    %v987 = vpop.f32.mrf.mxu0
    %v988 = vadd.f32 %v935, %v987
    %v989 = vand.u32 %v37, 4294901760
    %990 = vmatmul.f32.gmra.mxu0 %v989
    %v991 = vpop.f32.mrf.mxu0
    %v992 = vadd.f32 %v939, %v991
    %v993 = vand.u32 %v39, 4294901760
    %994 = vmatmul.f32.gmra.mxu0 %v993
    %v995 = vpop.f32.mrf.mxu0
    %v996 = vadd.f32 %v943, %v995
    %v997 = vand.u32 %v41, 4294901760
    %998 = vmatmul.f32.gmra.mxu0 %v997
    %v999 = vpop.f32.mrf.mxu0
    %v1000 = vadd.f32 %v947, %v999
    %v1001 = vand.u32 %v43, 4294901760
    %1002 = vmatmul.f32.gmra.mxu0 %v1001
    %v1003 = vpop.f32.mrf.mxu0
    %v1004 = vadd.f32 %v951, %v1003
    %1005 = vdwg.mxu0
    %v1006 = vmul.f32 %v988, %v988
    %v1007 = vmul.f32 %v992, %v992
    %v1008 = vmul.f32 %v988, %v992
    %v1009 = vsub.f32 %v996, %v1006
    %v1010 = vsub.f32 %v1000, %v1007
    %v1011 = vsub.f32 %v1004, %v1008
    %v1012 = vmul.f32 %v1008, 2.0
    %v1013 = vadd.f32 %v1012, 0.0001
    %v1014 = vmul.f32 %v1011, 2.0
    %v1015 = vadd.f32 %v1014, 0.0009
    %v1016 = vmul.f32 %v1013, %v1015
    %v1017 = vadd.f32 %v1006, %v1007
    %v1018 = vadd.f32 %v1017, 0.0001
    %v1019 = vadd.f32 %v1009, %v1010
    %v1020 = vadd.f32 %v1019, 0.0009
    %v1021 = vmul.f32 %v1018, %v1020
    %v1022 = vrcp.pop %v1021
    %v1023 = vmul.f32 %v1021, %v1022
    %v1024 = vsub.f32 1.0, %v1023
    %v1025 = vmul.f32 %v1022, %v1024
    %v1026 = vadd.f32 %v1022, %v1025
    %vm1027 = vweird.f32 %v1021
    %vm1028 = vweird.f32 %v1022
    %vm1029 = vmor %vm1027, %vm1028
    %v1030 = vsel %vm1029, %v1022, %v1026
    %v1031 = vand.u32 2147483647, %v1021
    %vm1032 = vcmp.eq.f32.partialorder %v1031, 8.507059e+37
    %v1033 = vand.u32 %v1021, 2147483648
    %v1034 = vor.u32 1.1754944e-38, %v1033
    %v1035 = vsel %vm1032, %v1034, %v1030
    %v1036 = vmul.f32 %v1016, %v1035
    %v1037 = vlaneseq
    %v1038 = vshrl.u32 %v1037, 7
    %vm1039 = vcmp.lt.s32.totalorder %v1038, 6
    %v1040 = vsel %vm1039, %v1036, 0.0
    %vm1041 = vcmask 293888
    %v1042 = vsel %vm1041, %v1040, 0.0
    %1043 = vadd.xlane.f32.xlu0 %v1042
    %v1044 = vpop.xlane.xlu0 %1043
    %v1045 = vrot.slane %v1044, 4
    %v1046 = vadd.f32 %v1044, %v1045
    %v1047 = vrot.slane %v1046, 2
    %v1048 = vadd.f32 %v1046, %v1047
    %v1049 = vrot.slane %v1048, 1
    %v1050 = vadd.f32 %v1048, %v1049
    %s1051 = vtos %v1050
    %s1052 = smul.f32 %s1051, 0.0046296297
    %s1053 = ssub.f32 1.0, %s1052
    %s1054 = scalar_lea.smem [#allocation5], 0
    %1055 = sst [smem:[%s1054]] %s1053
    %v1056 = vld [vmem:[%s3] sm:$0xff]
    %1058 = vst [vmem:[#allocation1] ss:$4 sm:$0xff] %v1056
    %v1059 = vld.sshfl [vmem:[#allocation1] sm:$0xff pattern:$0x73625140]
    %v1060 = vld.sshfl [vmem:[#allocation1 + $0x8] sm:$0xff pattern:$0x73625140]
    %v1061 = vld.sshfl [vmem:[#allocation1 + $0x10] sm:$0xff pattern:$0x73625140]
    %v1062 = vld.sshfl [vmem:[#allocation1 + $0x18] sm:$0xff pattern:$0x73625140]
    %1067 = vst [vmem:[#allocation1] ss:$4 sm:$0xff] %v1056
    %v1068 = vld.sshfl [vmem:[#allocation1] sm:$0xff pattern:$0x73625140]
    %v1069 = vld.sshfl [vmem:[#allocation1 + $0x8] sm:$0xff pattern:$0x73625140]
    %v1070 = vld.sshfl [vmem:[#allocation1 + $0x10] sm:$0xff pattern:$0x73625140]
    %v1071 = vld.sshfl [vmem:[#allocation1 + $0x18] sm:$0xff pattern:$0x73625140]
    %1076 = vmatpush.xpose.msra.mxu0 0.0
    %1077 = vmatpush.xpose.msra.mxu0 0.0
    %1078 = vmatpush.xpose.msra.mxu0 0.0
    %1079 = vmatpush.xpose.msra.mxu0 0.0
    %1080 = vmatpush.xpose.msra.mxu0 0.0
    %1081 = vmatpush.xpose.msra.mxu0 0.0
    %1082 = vmatpush.xpose.msra.mxu0 0.0
    %1083 = vmatpush.xpose.msra.mxu0 0.0
    %1084 = vmatpush.xpose.msra.mxu0 0.0
    %1085 = vmatpush.xpose.msra.mxu0 0.0
    %1086 = vmatpush.xpose.msra.mxu0 0.0
    %1087 = vmatpush.xpose.msra.mxu0 0.0
    %1088 = vmatpush.xpose.msra.mxu0 0.0
    %1089 = vmatpush.xpose.msra.mxu0 0.0
    %1090 = vmatpush.xpose.msra.mxu0 0.0
    %v1091 = vand.u32 %v1068, 4294901760
    %1092 = vmatpush.xpose.msra.mxu0 %v1091
    %v1093 = vand.u32 %v1059, 4294901760
    %v1094 = vsub.f32 %v1059, %v1093
    %v1095 = vand.u32 %v1094, 4294901760
    %v1096 = vsub.f32 %v1094, %v1095
    %v1097 = vand.u32 %v1096, 4294901760
    %1098 = vmatmul.f32.gmra.mxu0 %v1097
    %v1099 = vpop.f32.mrf.mxu0
    %v1100 = vadd.f32 0.0, %v1099
    %1101 = vdwg.mxu0
    %1102 = vmatpush.xpose.msra.mxu0 0.0
    %1103 = vmatpush.xpose.msra.mxu0 0.0
    %1104 = vmatpush.xpose.msra.mxu0 0.0
    %1105 = vmatpush.xpose.msra.mxu0 0.0
    %1106 = vmatpush.xpose.msra.mxu0 0.0
    %1107 = vmatpush.xpose.msra.mxu0 0.0
    %1108 = vmatpush.xpose.msra.mxu0 0.0
    %1109 = vmatpush.xpose.msra.mxu0 0.0
    %1110 = vmatpush.xpose.msra.mxu0 0.0
    %1111 = vmatpush.xpose.msra.mxu0 0.0
    %1112 = vmatpush.xpose.msra.mxu0 0.0
    %1113 = vmatpush.xpose.msra.mxu0 0.0
    %1114 = vmatpush.xpose.msra.mxu0 0.0
    %1115 = vmatpush.xpose.msra.mxu0 0.0
    %1116 = vmatpush.xpose.msra.mxu0 0.0
    %v1117 = vand.u32 %v1068, 4294901760
    %v1118 = vsub.f32 %v1068, %v1117
    %v1119 = vand.u32 %v1118, 4294901760
    %v1120 = vsub.f32 %v1118, %v1119
    %v1121 = vand.u32 %v1120, 4294901760
    %1122 = vmatpush.xpose.msra.mxu0 %v1121
    %v1123 = vand.u32 %v1059, 4294901760
    %1124 = vmatmul.f32.gmra.mxu0 %v1123
    %v1125 = vpop.f32.mrf.mxu0
    %v1126 = vadd.f32 %v1100, %v1125
    %1127 = vdwg.mxu0
    %1128 = vmatpush.xpose.msra.mxu0 0.0
    %1129 = vmatpush.xpose.msra.mxu0 0.0
    %1130 = vmatpush.xpose.msra.mxu0 0.0
    %1131 = vmatpush.xpose.msra.mxu0 0.0
    %1132 = vmatpush.xpose.msra.mxu0 0.0
    %1133 = vmatpush.xpose.msra.mxu0 0.0
    %1134 = vmatpush.xpose.msra.mxu0 0.0
    %1135 = vmatpush.xpose.msra.mxu0 0.0
    %1136 = vmatpush.xpose.msra.mxu0 0.0
    %1137 = vmatpush.xpose.msra.mxu0 0.0
    %1138 = vmatpush.xpose.msra.mxu0 0.0
    %1139 = vmatpush.xpose.msra.mxu0 0.0
    %1140 = vmatpush.xpose.msra.mxu0 0.0
    %1141 = vmatpush.xpose.msra.mxu0 0.0
    %1142 = vmatpush.xpose.msra.mxu0 0.0
    %v1143 = vand.u32 %v1068, 4294901760
    %v1144 = vsub.f32 %v1068, %v1143
    %1145 = vmatpush.xpose.msra.mxu0 %v1144
    %v1146 = vand.u32 %v1059, 4294901760
    %v1147 = vsub.f32 %v1059, %v1146
    %1148 = vmatmul.f32.gmra.mxu0 %v1147
    %v1149 = vpop.f32.mrf.mxu0
    %v1150 = vadd.f32 %v1126, %v1149
    %1151 = vdwg.mxu0
    %1152 = vmatpush.xpose.msra.mxu0 0.0
    %1153 = vmatpush.xpose.msra.mxu0 0.0
    %1154 = vmatpush.xpose.msra.mxu0 0.0
    %1155 = vmatpush.xpose.msra.mxu0 0.0
    %1156 = vmatpush.xpose.msra.mxu0 0.0
    %1157 = vmatpush.xpose.msra.mxu0 0.0
    %1158 = vmatpush.xpose.msra.mxu0 0.0
    %1159 = vmatpush.xpose.msra.mxu0 0.0
    %1160 = vmatpush.xpose.msra.mxu0 0.0
    %1161 = vmatpush.xpose.msra.mxu0 0.0
    %1162 = vmatpush.xpose.msra.mxu0 0.0
    %1163 = vmatpush.xpose.msra.mxu0 0.0
    %1164 = vmatpush.xpose.msra.mxu0 0.0
    %1165 = vmatpush.xpose.msra.mxu0 0.0
    %1166 = vmatpush.xpose.msra.mxu0 0.0
    %v1167 = vand.u32 %v1068, 4294901760
    %1168 = vmatpush.xpose.msra.mxu0 %v1167
    %v1169 = vand.u32 %v1059, 4294901760
    %v1170 = vsub.f32 %v1059, %v1169
    %v1171 = vand.u32 %v1170, 4294901760
    %1172 = vmatmul.f32.gmra.mxu0 %v1171
    %v1173 = vpop.f32.mrf.mxu0
    %v1174 = vadd.f32 %v1150, %v1173
    %1175 = vdwg.mxu0
    %1176 = vmatpush.xpose.msra.mxu0 0.0
    %1177 = vmatpush.xpose.msra.mxu0 0.0
    %1178 = vmatpush.xpose.msra.mxu0 0.0
    %1179 = vmatpush.xpose.msra.mxu0 0.0
    %1180 = vmatpush.xpose.msra.mxu0 0.0
    %1181 = vmatpush.xpose.msra.mxu0 0.0
    %1182 = vmatpush.xpose.msra.mxu0 0.0
    %1183 = vmatpush.xpose.msra.mxu0 0.0
    %1184 = vmatpush.xpose.msra.mxu0 0.0
    %1185 = vmatpush.xpose.msra.mxu0 0.0
    %1186 = vmatpush.xpose.msra.mxu0 0.0
    %1187 = vmatpush.xpose.msra.mxu0 0.0
    %1188 = vmatpush.xpose.msra.mxu0 0.0
    %1189 = vmatpush.xpose.msra.mxu0 0.0
    %1190 = vmatpush.xpose.msra.mxu0 0.0
    %v1191 = vand.u32 %v1068, 4294901760
    %v1192 = vsub.f32 %v1068, %v1191
    %v1193 = vand.u32 %v1192, 4294901760
    %1194 = vmatpush.xpose.msra.mxu0 %v1193
    %v1195 = vand.u32 %v1059, 4294901760
    %1196 = vmatmul.f32.gmra.mxu0 %v1195
    %v1197 = vpop.f32.mrf.mxu0
    %v1198 = vadd.f32 %v1174, %v1197
    %1199 = vdwg.mxu0
    %1200 = vmatpush.xpose.msra.mxu0 0.0
    %1201 = vmatpush.xpose.msra.mxu0 0.0
    %1202 = vmatpush.xpose.msra.mxu0 0.0
    %1203 = vmatpush.xpose.msra.mxu0 0.0
    %1204 = vmatpush.xpose.msra.mxu0 0.0
    %1205 = vmatpush.xpose.msra.mxu0 0.0
    %1206 = vmatpush.xpose.msra.mxu0 0.0
    %1207 = vmatpush.xpose.msra.mxu0 0.0
    %1208 = vmatpush.xpose.msra.mxu0 0.0
    %1209 = vmatpush.xpose.msra.mxu0 0.0
    %1210 = vmatpush.xpose.msra.mxu0 0.0
    %1211 = vmatpush.xpose.msra.mxu0 0.0
    %1212 = vmatpush.xpose.msra.mxu0 0.0
    %1213 = vmatpush.xpose.msra.mxu0 0.0
    %1214 = vmatpush.xpose.msra.mxu0 0.0
    %v1215 = vand.u32 %v1068, 4294901760
    %1216 = vmatpush.xpose.msra.mxu0 %v1215
    %v1217 = vand.u32 %v1059, 4294901760
    %1218 = vmatmul.f32.gmra.mxu0 %v1217
    %v1219 = vpop.f32.mrf.mxu0
    %v1220 = vadd.f32 %v1198, %v1219
    %1221 = vdwg.mxu0
    %1222 = vmatpush.xpose.msra.mxu0 0.0
    %1223 = vmatpush.xpose.msra.mxu0 0.0
    %1224 = vmatpush.xpose.msra.mxu0 0.0
    %1225 = vmatpush.xpose.msra.mxu0 0.0
    %1226 = vmatpush.xpose.msra.mxu0 0.0
    %1227 = vmatpush.xpose.msra.mxu0 0.0
    %1228 = vmatpush.xpose.msra.mxu0 0.0
    %1229 = vmatpush.xpose.msra.mxu0 0.0
    %1230 = vmatpush.xpose.msra.mxu0 0.0
    %1231 = vmatpush.xpose.msra.mxu0 0.0
    %1232 = vmatpush.xpose.msra.mxu0 0.0
    %1233 = vmatpush.xpose.msra.mxu0 0.0
    %1234 = vmatpush.xpose.msra.mxu0 0.0
    %1235 = vmatpush.xpose.msra.mxu0 0.0
    %1236 = vmatpush.xpose.msra.mxu0 0.0
    %v1237 = vand.u32 %v1069, 4294901760
    %1238 = vmatpush.xpose.msra.mxu0 %v1237
    %v1239 = vand.u32 %v1060, 4294901760
    %v1240 = vsub.f32 %v1060, %v1239
    %v1241 = vand.u32 %v1240, 4294901760
    %v1242 = vsub.f32 %v1240, %v1241
    %v1243 = vand.u32 %v1242, 4294901760
    %1244 = vmatmul.f32.gmra.mxu0 %v1243
    %v1245 = vpop.f32.mrf.mxu0
    %v1246 = vadd.f32 %v1220, %v1245
    %1247 = vdwg.mxu0
    %1248 = vmatpush.xpose.msra.mxu0 0.0
    %1249 = vmatpush.xpose.msra.mxu0 0.0
    %1250 = vmatpush.xpose.msra.mxu0 0.0
    %1251 = vmatpush.xpose.msra.mxu0 0.0
    %1252 = vmatpush.xpose.msra.mxu0 0.0
    %1253 = vmatpush.xpose.msra.mxu0 0.0
    %1254 = vmatpush.xpose.msra.mxu0 0.0
    %1255 = vmatpush.xpose.msra.mxu0 0.0
    %1256 = vmatpush.xpose.msra.mxu0 0.0
    %1257 = vmatpush.xpose.msra.mxu0 0.0
    %1258 = vmatpush.xpose.msra.mxu0 0.0
    %1259 = vmatpush.xpose.msra.mxu0 0.0
    %1260 = vmatpush.xpose.msra.mxu0 0.0
    %1261 = vmatpush.xpose.msra.mxu0 0.0
    %1262 = vmatpush.xpose.msra.mxu0 0.0
    %v1263 = vand.u32 %v1069, 4294901760
    %v1264 = vsub.f32 %v1069, %v1263
    %v1265 = vand.u32 %v1264, 4294901760
    %v1266 = vsub.f32 %v1264, %v1265
    %v1267 = vand.u32 %v1266, 4294901760
    %1268 = vmatpush.xpose.msra.mxu0 %v1267
    %v1269 = vand.u32 %v1060, 4294901760
    %1270 = vmatmul.f32.gmra.mxu0 %v1269
    %v1271 = vpop.f32.mrf.mxu0
    %v1272 = vadd.f32 %v1246, %v1271
    %1273 = vdwg.mxu0
    %1274 = vmatpush.xpose.msra.mxu0 0.0
    %1275 = vmatpush.xpose.msra.mxu0 0.0
    %1276 = vmatpush.xpose.msra.mxu0 0.0
    %1277 = vmatpush.xpose.msra.mxu0 0.0
    %1278 = vmatpush.xpose.msra.mxu0 0.0
    %1279 = vmatpush.xpose.msra.mxu0 0.0
    %1280 = vmatpush.xpose.msra.mxu0 0.0
    %1281 = vmatpush.xpose.msra.mxu0 0.0
    %1282 = vmatpush.xpose.msra.mxu0 0.0
    %1283 = vmatpush.xpose.msra.mxu0 0.0
    %1284 = vmatpush.xpose.msra.mxu0 0.0
    %1285 = vmatpush.xpose.msra.mxu0 0.0
    %1286 = vmatpush.xpose.msra.mxu0 0.0
    %1287 = vmatpush.xpose.msra.mxu0 0.0
    %1288 = vmatpush.xpose.msra.mxu0 0.0
    %v1289 = vand.u32 %v1069, 4294901760
    %v1290 = vsub.f32 %v1069, %v1289
    %1291 = vmatpush.xpose.msra.mxu0 %v1290
    %v1292 = vand.u32 %v1060, 4294901760
    %v1293 = vsub.f32 %v1060, %v1292
    %1294 = vmatmul.f32.gmra.mxu0 %v1293
    %v1295 = vpop.f32.mrf.mxu0
    %v1296 = vadd.f32 %v1272, %v1295
    %1297 = vdwg.mxu0
    %1298 = vmatpush.xpose.msra.mxu0 0.0
    %1299 = vmatpush.xpose.msra.mxu0 0.0
    %1300 = vmatpush.xpose.msra.mxu0 0.0
    %1301 = vmatpush.xpose.msra.mxu0 0.0
    %1302 = vmatpush.xpose.msra.mxu0 0.0
    %1303 = vmatpush.xpose.msra.mxu0 0.0
    %1304 = vmatpush.xpose.msra.mxu0 0.0
    %1305 = vmatpush.xpose.msra.mxu0 0.0
    %1306 = vmatpush.xpose.msra.mxu0 0.0
    %1307 = vmatpush.xpose.msra.mxu0 0.0
    %1308 = vmatpush.xpose.msra.mxu0 0.0
    %1309 = vmatpush.xpose.msra.mxu0 0.0
    %1310 = vmatpush.xpose.msra.mxu0 0.0
    %1311 = vmatpush.xpose.msra.mxu0 0.0
    %1312 = vmatpush.xpose.msra.mxu0 0.0
    %v1313 = vand.u32 %v1069, 4294901760
    %1314 = vmatpush.xpose.msra.mxu0 %v1313
    %v1315 = vand.u32 %v1060, 4294901760
    %v1316 = vsub.f32 %v1060, %v1315
    %v1317 = vand.u32 %v1316, 4294901760
    %1318 = vmatmul.f32.gmra.mxu0 %v1317
    %v1319 = vpop.f32.mrf.mxu0
    %v1320 = vadd.f32 %v1296, %v1319
    %1321 = vdwg.mxu0
    %1322 = vmatpush.xpose.msra.mxu0 0.0
    %1323 = vmatpush.xpose.msra.mxu0 0.0
    %1324 = vmatpush.xpose.msra.mxu0 0.0
    %1325 = vmatpush.xpose.msra.mxu0 0.0
    %1326 = vmatpush.xpose.msra.mxu0 0.0
    %1327 = vmatpush.xpose.msra.mxu0 0.0
    %1328 = vmatpush.xpose.msra.mxu0 0.0
    %1329 = vmatpush.xpose.msra.mxu0 0.0
    %1330 = vmatpush.xpose.msra.mxu0 0.0
    %1331 = vmatpush.xpose.msra.mxu0 0.0
    %1332 = vmatpush.xpose.msra.mxu0 0.0
    %1333 = vmatpush.xpose.msra.mxu0 0.0
    %1334 = vmatpush.xpose.msra.mxu0 0.0
    %1335 = vmatpush.xpose.msra.mxu0 0.0
    %1336 = vmatpush.xpose.msra.mxu0 0.0
    %v1337 = vand.u32 %v1069, 4294901760
    %v1338 = vsub.f32 %v1069, %v1337
    %v1339 = vand.u32 %v1338, 4294901760
    %1340 = vmatpush.xpose.msra.mxu0 %v1339
    %v1341 = vand.u32 %v1060, 4294901760
    %1342 = vmatmul.f32.gmra.mxu0 %v1341
    %v1343 = vpop.f32.mrf.mxu0
    %v1344 = vadd.f32 %v1320, %v1343
    %1345 = vdwg.mxu0
    %1346 = vmatpush.xpose.msra.mxu0 0.0
    %1347 = vmatpush.xpose.msra.mxu0 0.0
    %1348 = vmatpush.xpose.msra.mxu0 0.0
    %1349 = vmatpush.xpose.msra.mxu0 0.0
    %1350 = vmatpush.xpose.msra.mxu0 0.0
    %1351 = vmatpush.xpose.msra.mxu0 0.0
    %1352 = vmatpush.xpose.msra.mxu0 0.0
    %1353 = vmatpush.xpose.msra.mxu0 0.0
    %1354 = vmatpush.xpose.msra.mxu0 0.0
    %1355 = vmatpush.xpose.msra.mxu0 0.0
    %1356 = vmatpush.xpose.msra.mxu0 0.0
    %1357 = vmatpush.xpose.msra.mxu0 0.0
    %1358 = vmatpush.xpose.msra.mxu0 0.0
    %1359 = vmatpush.xpose.msra.mxu0 0.0
    %1360 = vmatpush.xpose.msra.mxu0 0.0
    %v1361 = vand.u32 %v1069, 4294901760
    %1362 = vmatpush.xpose.msra.mxu0 %v1361
    %v1363 = vand.u32 %v1060, 4294901760
    %1364 = vmatmul.f32.gmra.mxu0 %v1363
    %v1365 = vpop.f32.mrf.mxu0
    %v1366 = vadd.f32 %v1344, %v1365
    %1367 = vdwg.mxu0
    %1368 = vmatpush.xpose.msra.mxu0 0.0
    %1369 = vmatpush.xpose.msra.mxu0 0.0
    %1370 = vmatpush.xpose.msra.mxu0 0.0
    %1371 = vmatpush.xpose.msra.mxu0 0.0
    %1372 = vmatpush.xpose.msra.mxu0 0.0
    %1373 = vmatpush.xpose.msra.mxu0 0.0
    %1374 = vmatpush.xpose.msra.mxu0 0.0
    %1375 = vmatpush.xpose.msra.mxu0 0.0
    %1376 = vmatpush.xpose.msra.mxu0 0.0
    %1377 = vmatpush.xpose.msra.mxu0 0.0
    %1378 = vmatpush.xpose.msra.mxu0 0.0
    %1379 = vmatpush.xpose.msra.mxu0 0.0
    %1380 = vmatpush.xpose.msra.mxu0 0.0
    %1381 = vmatpush.xpose.msra.mxu0 0.0
    %1382 = vmatpush.xpose.msra.mxu0 0.0
    %v1383 = vand.u32 %v1070, 4294901760
    %1384 = vmatpush.xpose.msra.mxu0 %v1383
    %v1385 = vand.u32 %v1061, 4294901760
    %v1386 = vsub.f32 %v1061, %v1385
    %v1387 = vand.u32 %v1386, 4294901760
    %v1388 = vsub.f32 %v1386, %v1387
    %v1389 = vand.u32 %v1388, 4294901760
    %1390 = vmatmul.f32.gmra.mxu0 %v1389
    %v1391 = vpop.f32.mrf.mxu0
    %v1392 = vadd.f32 %v1366, %v1391
    %1393 = vdwg.mxu0
    %1394 = vmatpush.xpose.msra.mxu0 0.0
    %1395 = vmatpush.xpose.msra.mxu0 0.0
    %1396 = vmatpush.xpose.msra.mxu0 0.0
    %1397 = vmatpush.xpose.msra.mxu0 0.0
    %1398 = vmatpush.xpose.msra.mxu0 0.0
    %1399 = vmatpush.xpose.msra.mxu0 0.0
    %1400 = vmatpush.xpose.msra.mxu0 0.0
    %1401 = vmatpush.xpose.msra.mxu0 0.0
    %1402 = vmatpush.xpose.msra.mxu0 0.0
    %1403 = vmatpush.xpose.msra.mxu0 0.0
    %1404 = vmatpush.xpose.msra.mxu0 0.0
    %1405 = vmatpush.xpose.msra.mxu0 0.0
    %1406 = vmatpush.xpose.msra.mxu0 0.0
    %1407 = vmatpush.xpose.msra.mxu0 0.0
    %1408 = vmatpush.xpose.msra.mxu0 0.0
    %v1409 = vand.u32 %v1070, 4294901760
    %v1410 = vsub.f32 %v1070, %v1409
    %v1411 = vand.u32 %v1410, 4294901760
    %v1412 = vsub.f32 %v1410, %v1411
    %v1413 = vand.u32 %v1412, 4294901760
    %1414 = vmatpush.xpose.msra.mxu0 %v1413
    %v1415 = vand.u32 %v1061, 4294901760
    %1416 = vmatmul.f32.gmra.mxu0 %v1415
    %v1417 = vpop.f32.mrf.mxu0
    %v1418 = vadd.f32 %v1392, %v1417
    %1419 = vdwg.mxu0
    %1420 = vmatpush.xpose.msra.mxu0 0.0
    %1421 = vmatpush.xpose.msra.mxu0 0.0
    %1422 = vmatpush.xpose.msra.mxu0 0.0
    %1423 = vmatpush.xpose.msra.mxu0 0.0
    %1424 = vmatpush.xpose.msra.mxu0 0.0
    %1425 = vmatpush.xpose.msra.mxu0 0.0
    %1426 = vmatpush.xpose.msra.mxu0 0.0
    %1427 = vmatpush.xpose.msra.mxu0 0.0
    %1428 = vmatpush.xpose.msra.mxu0 0.0
    %1429 = vmatpush.xpose.msra.mxu0 0.0
    %1430 = vmatpush.xpose.msra.mxu0 0.0
    %1431 = vmatpush.xpose.msra.mxu0 0.0
    %1432 = vmatpush.xpose.msra.mxu0 0.0
    %1433 = vmatpush.xpose.msra.mxu0 0.0
    %1434 = vmatpush.xpose.msra.mxu0 0.0
    %v1435 = vand.u32 %v1070, 4294901760
    %v1436 = vsub.f32 %v1070, %v1435
    %1437 = vmatpush.xpose.msra.mxu0 %v1436
    %v1438 = vand.u32 %v1061, 4294901760
    %v1439 = vsub.f32 %v1061, %v1438
    %1440 = vmatmul.f32.gmra.mxu0 %v1439
    %v1441 = vpop.f32.mrf.mxu0
    %v1442 = vadd.f32 %v1418, %v1441
    %1443 = vdwg.mxu0
    %1444 = vmatpush.xpose.msra.mxu0 0.0
    %1445 = vmatpush.xpose.msra.mxu0 0.0
    %1446 = vmatpush.xpose.msra.mxu0 0.0
    %1447 = vmatpush.xpose.msra.mxu0 0.0
    %1448 = vmatpush.xpose.msra.mxu0 0.0
    %1449 = vmatpush.xpose.msra.mxu0 0.0
    %1450 = vmatpush.xpose.msra.mxu0 0.0
    %1451 = vmatpush.xpose.msra.mxu0 0.0
    %1452 = vmatpush.xpose.msra.mxu0 0.0
    %1453 = vmatpush.xpose.msra.mxu0 0.0
    %1454 = vmatpush.xpose.msra.mxu0 0.0
    %1455 = vmatpush.xpose.msra.mxu0 0.0
    %1456 = vmatpush.xpose.msra.mxu0 0.0
    %1457 = vmatpush.xpose.msra.mxu0 0.0
    %1458 = vmatpush.xpose.msra.mxu0 0.0
    %v1459 = vand.u32 %v1070, 4294901760
    %1460 = vmatpush.xpose.msra.mxu0 %v1459
    %v1461 = vand.u32 %v1061, 4294901760
    %v1462 = vsub.f32 %v1061, %v1461
    %v1463 = vand.u32 %v1462, 4294901760
    %1464 = vmatmul.f32.gmra.mxu0 %v1463
    %v1465 = vpop.f32.mrf.mxu0
    %v1466 = vadd.f32 %v1442, %v1465
    %1467 = vdwg.mxu0
    %1468 = vmatpush.xpose.msra.mxu0 0.0
    %1469 = vmatpush.xpose.msra.mxu0 0.0
    %1470 = vmatpush.xpose.msra.mxu0 0.0
    %1471 = vmatpush.xpose.msra.mxu0 0.0
    %1472 = vmatpush.xpose.msra.mxu0 0.0
    %1473 = vmatpush.xpose.msra.mxu0 0.0
    %1474 = vmatpush.xpose.msra.mxu0 0.0
    %1475 = vmatpush.xpose.msra.mxu0 0.0
    %1476 = vmatpush.xpose.msra.mxu0 0.0
    %1477 = vmatpush.xpose.msra.mxu0 0.0
    %1478 = vmatpush.xpose.msra.mxu0 0.0
    %1479 = vmatpush.xpose.msra.mxu0 0.0
    %1480 = vmatpush.xpose.msra.mxu0 0.0
    %1481 = vmatpush.xpose.msra.mxu0 0.0
    %1482 = vmatpush.xpose.msra.mxu0 0.0
    %v1483 = vand.u32 %v1070, 4294901760
    %v1484 = vsub.f32 %v1070, %v1483
    %v1485 = vand.u32 %v1484, 4294901760
    %1486 = vmatpush.xpose.msra.mxu0 %v1485
    %v1487 = vand.u32 %v1061, 4294901760
    %1488 = vmatmul.f32.gmra.mxu0 %v1487
    %v1489 = vpop.f32.mrf.mxu0
    %v1490 = vadd.f32 %v1466, %v1489
    %1491 = vdwg.mxu0
    %1492 = vmatpush.xpose.msra.mxu0 0.0
    %1493 = vmatpush.xpose.msra.mxu0 0.0
    %1494 = vmatpush.xpose.msra.mxu0 0.0
    %1495 = vmatpush.xpose.msra.mxu0 0.0
    %1496 = vmatpush.xpose.msra.mxu0 0.0
    %1497 = vmatpush.xpose.msra.mxu0 0.0
    %1498 = vmatpush.xpose.msra.mxu0 0.0
    %1499 = vmatpush.xpose.msra.mxu0 0.0
    %1500 = vmatpush.xpose.msra.mxu0 0.0
    %1501 = vmatpush.xpose.msra.mxu0 0.0
    %1502 = vmatpush.xpose.msra.mxu0 0.0
    %1503 = vmatpush.xpose.msra.mxu0 0.0
    %1504 = vmatpush.xpose.msra.mxu0 0.0
    %1505 = vmatpush.xpose.msra.mxu0 0.0
    %1506 = vmatpush.xpose.msra.mxu0 0.0
    %v1507 = vand.u32 %v1070, 4294901760
    %1508 = vmatpush.xpose.msra.mxu0 %v1507
    %v1509 = vand.u32 %v1061, 4294901760
    %1510 = vmatmul.f32.gmra.mxu0 %v1509
    %v1511 = vpop.f32.mrf.mxu0
    %v1512 = vadd.f32 %v1490, %v1511
    %1513 = vdwg.mxu0
    %1514 = vmatpush.xpose.msra.mxu0 0.0
    %1515 = vmatpush.xpose.msra.mxu0 0.0
    %1516 = vmatpush.xpose.msra.mxu0 0.0
    %1517 = vmatpush.xpose.msra.mxu0 0.0
    %1518 = vmatpush.xpose.msra.mxu0 0.0
    %1519 = vmatpush.xpose.msra.mxu0 0.0
    %1520 = vmatpush.xpose.msra.mxu0 0.0
    %1521 = vmatpush.xpose.msra.mxu0 0.0
    %1522 = vmatpush.xpose.msra.mxu0 0.0
    %1523 = vmatpush.xpose.msra.mxu0 0.0
    %1524 = vmatpush.xpose.msra.mxu0 0.0
    %1525 = vmatpush.xpose.msra.mxu0 0.0
    %1526 = vmatpush.xpose.msra.mxu0 0.0
    %1527 = vmatpush.xpose.msra.mxu0 0.0
    %1528 = vmatpush.xpose.msra.mxu0 0.0
    %v1529 = vand.u32 %v1071, 4294901760
    %1530 = vmatpush.xpose.msra.mxu0 %v1529
    %v1531 = vand.u32 %v1062, 4294901760
    %v1532 = vsub.f32 %v1062, %v1531
    %v1533 = vand.u32 %v1532, 4294901760
    %v1534 = vsub.f32 %v1532, %v1533
    %v1535 = vand.u32 %v1534, 4294901760
    %1536 = vmatmul.f32.gmra.mxu0 %v1535
    %v1537 = vpop.f32.mrf.mxu0
    %v1538 = vadd.f32 %v1512, %v1537
    %1539 = vdwg.mxu0
    %1540 = vmatpush.xpose.msra.mxu0 0.0
    %1541 = vmatpush.xpose.msra.mxu0 0.0
    %1542 = vmatpush.xpose.msra.mxu0 0.0
    %1543 = vmatpush.xpose.msra.mxu0 0.0
    %1544 = vmatpush.xpose.msra.mxu0 0.0
    %1545 = vmatpush.xpose.msra.mxu0 0.0
    %1546 = vmatpush.xpose.msra.mxu0 0.0
    %1547 = vmatpush.xpose.msra.mxu0 0.0
    %1548 = vmatpush.xpose.msra.mxu0 0.0
    %1549 = vmatpush.xpose.msra.mxu0 0.0
    %1550 = vmatpush.xpose.msra.mxu0 0.0
    %1551 = vmatpush.xpose.msra.mxu0 0.0
    %1552 = vmatpush.xpose.msra.mxu0 0.0
    %1553 = vmatpush.xpose.msra.mxu0 0.0
    %1554 = vmatpush.xpose.msra.mxu0 0.0
    %v1555 = vand.u32 %v1071, 4294901760
    %v1556 = vsub.f32 %v1071, %v1555
    %v1557 = vand.u32 %v1556, 4294901760
    %v1558 = vsub.f32 %v1556, %v1557
    %v1559 = vand.u32 %v1558, 4294901760
    %1560 = vmatpush.xpose.msra.mxu0 %v1559
    %v1561 = vand.u32 %v1062, 4294901760
    %1562 = vmatmul.f32.gmra.mxu0 %v1561
    %v1563 = vpop.f32.mrf.mxu0
    %v1564 = vadd.f32 %v1538, %v1563
    %1565 = vdwg.mxu0
    %1566 = vmatpush.xpose.msra.mxu0 0.0
    %1567 = vmatpush.xpose.msra.mxu0 0.0
    %1568 = vmatpush.xpose.msra.mxu0 0.0
    %1569 = vmatpush.xpose.msra.mxu0 0.0
    %1570 = vmatpush.xpose.msra.mxu0 0.0
    %1571 = vmatpush.xpose.msra.mxu0 0.0
    %1572 = vmatpush.xpose.msra.mxu0 0.0
    %1573 = vmatpush.xpose.msra.mxu0 0.0
    %1574 = vmatpush.xpose.msra.mxu0 0.0
    %1575 = vmatpush.xpose.msra.mxu0 0.0
    %1576 = vmatpush.xpose.msra.mxu0 0.0
    %1577 = vmatpush.xpose.msra.mxu0 0.0
    %1578 = vmatpush.xpose.msra.mxu0 0.0
    %1579 = vmatpush.xpose.msra.mxu0 0.0
    %1580 = vmatpush.xpose.msra.mxu0 0.0
    %v1581 = vand.u32 %v1071, 4294901760
    %v1582 = vsub.f32 %v1071, %v1581
    %1583 = vmatpush.xpose.msra.mxu0 %v1582
    %v1584 = vand.u32 %v1062, 4294901760
    %v1585 = vsub.f32 %v1062, %v1584
    %1586 = vmatmul.f32.gmra.mxu0 %v1585
    %v1587 = vpop.f32.mrf.mxu0
    %v1588 = vadd.f32 %v1564, %v1587
    %1589 = vdwg.mxu0
    %1590 = vmatpush.xpose.msra.mxu0 0.0
    %1591 = vmatpush.xpose.msra.mxu0 0.0
    %1592 = vmatpush.xpose.msra.mxu0 0.0
    %1593 = vmatpush.xpose.msra.mxu0 0.0
    %1594 = vmatpush.xpose.msra.mxu0 0.0
    %1595 = vmatpush.xpose.msra.mxu0 0.0
    %1596 = vmatpush.xpose.msra.mxu0 0.0
    %1597 = vmatpush.xpose.msra.mxu0 0.0
    %1598 = vmatpush.xpose.msra.mxu0 0.0
    %1599 = vmatpush.xpose.msra.mxu0 0.0
    %1600 = vmatpush.xpose.msra.mxu0 0.0
    %1601 = vmatpush.xpose.msra.mxu0 0.0
    %1602 = vmatpush.xpose.msra.mxu0 0.0
    %1603 = vmatpush.xpose.msra.mxu0 0.0
    %1604 = vmatpush.xpose.msra.mxu0 0.0
    %v1605 = vand.u32 %v1071, 4294901760
    %1606 = vmatpush.xpose.msra.mxu0 %v1605
    %v1607 = vand.u32 %v1062, 4294901760
    %v1608 = vsub.f32 %v1062, %v1607
    %v1609 = vand.u32 %v1608, 4294901760
    %1610 = vmatmul.f32.gmra.mxu0 %v1609
    %v1611 = vpop.f32.mrf.mxu0
    %v1612 = vadd.f32 %v1588, %v1611
    %1613 = vdwg.mxu0
    %1614 = vmatpush.xpose.msra.mxu0 0.0
    %1615 = vmatpush.xpose.msra.mxu0 0.0
    %1616 = vmatpush.xpose.msra.mxu0 0.0
    %1617 = vmatpush.xpose.msra.mxu0 0.0
    %1618 = vmatpush.xpose.msra.mxu0 0.0
    %1619 = vmatpush.xpose.msra.mxu0 0.0
    %1620 = vmatpush.xpose.msra.mxu0 0.0
    %1621 = vmatpush.xpose.msra.mxu0 0.0
    %1622 = vmatpush.xpose.msra.mxu0 0.0
    %1623 = vmatpush.xpose.msra.mxu0 0.0
    %1624 = vmatpush.xpose.msra.mxu0 0.0
    %1625 = vmatpush.xpose.msra.mxu0 0.0
    %1626 = vmatpush.xpose.msra.mxu0 0.0
    %1627 = vmatpush.xpose.msra.mxu0 0.0
    %1628 = vmatpush.xpose.msra.mxu0 0.0
    %v1629 = vand.u32 %v1071, 4294901760
    %v1630 = vsub.f32 %v1071, %v1629
    %v1631 = vand.u32 %v1630, 4294901760
    %1632 = vmatpush.xpose.msra.mxu0 %v1631
    %v1633 = vand.u32 %v1062, 4294901760
    %1634 = vmatmul.f32.gmra.mxu0 %v1633
    %v1635 = vpop.f32.mrf.mxu0
    %v1636 = vadd.f32 %v1612, %v1635
    %1637 = vdwg.mxu0
    %1638 = vmatpush.xpose.msra.mxu0 0.0
    %1639 = vmatpush.xpose.msra.mxu0 0.0
    %1640 = vmatpush.xpose.msra.mxu0 0.0
    %1641 = vmatpush.xpose.msra.mxu0 0.0
    %1642 = vmatpush.xpose.msra.mxu0 0.0
    %1643 = vmatpush.xpose.msra.mxu0 0.0
    %1644 = vmatpush.xpose.msra.mxu0 0.0
    %1645 = vmatpush.xpose.msra.mxu0 0.0
    %1646 = vmatpush.xpose.msra.mxu0 0.0
    %1647 = vmatpush.xpose.msra.mxu0 0.0
    %1648 = vmatpush.xpose.msra.mxu0 0.0
    %1649 = vmatpush.xpose.msra.mxu0 0.0
    %1650 = vmatpush.xpose.msra.mxu0 0.0
    %1651 = vmatpush.xpose.msra.mxu0 0.0
    %1652 = vmatpush.xpose.msra.mxu0 0.0
    %v1653 = vand.u32 %v1071, 4294901760
    %1654 = vmatpush.xpose.msra.mxu0 %v1653
    %v1655 = vand.u32 %v1062, 4294901760
    %1656 = vmatmul.f32.gmra.mxu0 %v1655
    %v1657 = vpop.f32.mrf.mxu0
    %v1658 = vadd.f32 %v1636, %v1657
    %1659 = vdwg.mxu0
    %v1660 = vlaneseq
    %v1661 = vand.u32 %v1660, 127
    %vm1662 = vcmp.eq.s32.totalorder %v1038, 0
    %vm1663 = vcmp.eq.s32.totalorder %v1661, 1
    %vm1664 = vmand %vm1662, %vm1663
    %v1665 = vsel %vm1664, %v1658, 0.0
    %vm1666 = vcmask 9216
    %v1667 = vsel %vm1666, %v1665, 0.0
    %1668 = vadd.xlane.f32.xlu0 %v1667
    %v1669 = vpop.xlane.xlu0 %1668
    %v1670 = vrot.slane %v1669, 4
    %v1671 = vadd.f32 %v1669, %v1670
    %v1672 = vrot.slane %v1671, 2
    %v1673 = vadd.f32 %v1671, %v1672
    %v1674 = vrot.slane %v1673, 1
    %v1675 = vadd.f32 %v1673, %v1674
    %s1676 = vtos %v1675
    %vm1677 = vcmp.eq.s32.totalorder %v1661, 0
    %vm1678 = vmand %vm1662, %vm1677
    %v1679 = vsel %vm1678, %v1658, 0.0
    %v1680 = vsel %vm1666, %v1679, 0.0
    %1681 = vadd.xlane.f32.xlu0 %v1680
    %v1682 = vpop.xlane.xlu0 %1681
    %v1683 = vrot.slane %v1682, 4
    %v1684 = vadd.f32 %v1682, %v1683
    %v1685 = vrot.slane %v1684, 2
    %v1686 = vadd.f32 %v1684, %v1685
    %v1687 = vrot.slane %v1686, 1
    %v1688 = vadd.f32 %v1686, %v1687
    %s1689 = vtos %v1688
    %s1690 = smax.f32 %s1689, 1e-16
    %vm1691 = vcmp.eq.s32.totalorder %v1038, 1
    %vm1692 = vmand %vm1691, %vm1663
    %v1693 = vsel %vm1692, %v1658, 0.0
    %v1694 = vsel %vm1666, %v1693, 0.0
    %1695 = vadd.xlane.f32.xlu0 %v1694
    %v1696 = vpop.xlane.xlu0 %1695
    %v1697 = vrot.slane %v1696, 4
    %v1698 = vadd.f32 %v1696, %v1697
    %v1699 = vrot.slane %v1698, 2
    %v1700 = vadd.f32 %v1698, %v1699
    %v1701 = vrot.slane %v1700, 1
    %v1702 = vadd.f32 %v1700, %v1701
    %s1703 = vtos %v1702
    %s1704 = smax.f32 %s1703, 1e-16
    %s1705 = smul.f32 %s1690, %s1704
    %v1706 = vstv %s1705
    %v1707 = vrsqrt.pop %v1706
    %v1708 = vmul.f32 %v1707, %v1706
    %v1709 = vmul.f32 %v1708, %v1707
    %v1710 = vmul.f32 0.5, %v1709
    %v1711 = vsub.f32 1.5, %v1710
    %v1712 = vmul.f32 %v1707, %v1711
    %vm1713 = vweird.f32 %v1706
    %vm1714 = vweird.f32 %v1707
    %vm1715 = vmor %vm1713, %vm1714
    %v1716 = vsel %vm1715, %v1707, %v1712
    %s1717 = vtos %v1716
    %s1718 = smul.f32 %s1676, %s1717
    %s1719 = sadd.f32 %s1718, 1.0
    %v1720 = vrcp.pop 2.0
    %v1721 = vmul.f32 2.0, %v1720
    %v1722 = vsub.f32 1.0, %v1721
    %v1723 = vmul.f32 %v1720, %v1722
    %v1724 = vadd.f32 %v1720, %v1723
    %vm1725 = vweird.f32 %v1720
    %v1726 = vsel %vm1725, %v1720, %v1724
    %s1727 = vtos %v1726
    %s1728 = smul.f32 %s1719, %s1727
    %s1729 = ssub.f32 1.0, %s1728
    %s1730 = smul.f32 %s1729, %s1729
    %s1731 = smul.f32 %s1730, 10.0
    %s1732 = scalar_lea.smem [#allocation5], 1
    %1733 = sst [smem:[%s1732]] %s1731
    // Predicated region
    $region22: #{style_transfer_loss.1} parent=1 // pred_check
      _
    $region23: #{style_transfer_loss.1} parent=1 // pred_check_branch
      %1735 = sbr.rel (0) target = $region25
    $region24: #{style_transfer_loss.1} parent=1 // pred_region
      %1737 = vsyncadd [#allocation4], 0
      %s1739 = sshll.u32 %s4, 4
      %s1740 = int_to_ptr.vmem [resolvable:$true] %s1739
      %1742 = dma.smem_to_vmem [#allocation5], 16, %s1740, [#allocation4]
    $region25: #{style_transfer_loss.1} parent=1 // pred_fallthru
      _
    // Predicated region
    $region26: #{style_transfer_loss.1} parent=1 // pred_check
      _
    $region27: #{style_transfer_loss.1} parent=1 // pred_check_branch
      %1744 = sbr.rel (0) target = $region29
    $region28: #{style_transfer_loss.1} parent=1 // pred_region
      %1746 = dma.done [#allocation4], 16
    $region29: #{style_transfer_loss.1} parent=1 // pred_fallthru
      _
    %1747 = sfence
    %1748 = vsyncpa [#allocation3], 1
    %1749 = vsyncpa [#allocation4], 1

</llo_original>
